<compile_context>
chip_gen: v5e
topology: v5e:2x2
jax: 0.10.0
libtpu: 0.0.40
codegen_flags: <defaults>
</compile_context>

<pallas_src>
import functools
from math import sqrt

import jax
import jax.numpy as jnp
from jax.experimental import pallas as pl
from jax.experimental.pallas import tpu as pltpu


# --------------------------- tiled matmul kernels -----------------------------

def _matmul_kernel(x_ref, w_ref, o_ref, acc_ref):
    # grid = (M//tm, N//tn, K//tk); K is the last ("arbitrary") axis.
    @pl.when(pl.program_id(2) == 0)
    def _init():
        acc_ref[...] = jnp.zeros_like(acc_ref)

    acc_ref[...] += jnp.dot(x_ref[...], w_ref[...],
                            preferred_element_type=jnp.float32)

    @pl.when(pl.program_id(2) == pl.num_programs(2) - 1)
    def _flush():
        o_ref[...] = acc_ref[...].astype(o_ref.dtype)


def _matmul_bias_kernel(x_ref, w_ref, b_ref, o_ref, acc_ref):
    @pl.when(pl.program_id(2) == 0)
    def _init():
        acc_ref[...] = jnp.zeros_like(acc_ref)

    acc_ref[...] += jnp.dot(x_ref[...], w_ref[...],
                            preferred_element_type=jnp.float32)

    @pl.when(pl.program_id(2) == pl.num_programs(2) - 1)
    def _flush():
        # bias added once, only when the K reduction is complete
        o_ref[...] = (acc_ref[...] + b_ref[...].astype(jnp.float32)).astype(o_ref.dtype)


def _pick_tile(dim, target):
    """Largest tile <= target that divides dim (prefers 128-multiples), else full dim."""
    if dim <= target:
        return dim
    t = target
    while t >= 128:
        if dim % t == 0:
            return t
        t //= 2
    return dim


def pallas_linear(x2d, w, b=None, *, tm=256, tn=512, tk=512):
    """x2d: (M, K), w: (K, N) (already (in, out) layout), b: (N,) or None -> (M, N).

    Tiled over (M, N, K) with a fp32 VMEM accumulator; K is the reduction
    ("arbitrary") axis. Default tile targets fit the 16/32 MiB scoped-VMEM
    defaults on v5e/v6e/v7x with double-buffering headroom.
    """
    M, K = x2d.shape
    K2, N = w.shape
    assert K == K2
    tm = _pick_tile(M, tm)
    tn = _pick_tile(N, tn)
    tk = _pick_tile(K, tk)
    grid = (M // tm, N // tn, K // tk)

    x_spec = pl.BlockSpec((tm, tk), lambda i, j, k: (i, k))
    w_spec = pl.BlockSpec((tk, tn), lambda i, j, k: (k, j))
    o_spec = pl.BlockSpec((tm, tn), lambda i, j, k: (i, j))

    itemsize = jnp.dtype(x2d.dtype).itemsize
    cost = pl.CostEstimate(
        flops=2 * M * N * K,
        transcendentals=0,
        bytes_accessed=(M * K + K * N + M * N + (N if b is not None else 0)) * itemsize,
    )
    cparams = pltpu.CompilerParams(
        dimension_semantics=("parallel", "parallel", "arbitrary"))

    if b is None:
        return pl.pallas_call(
            _matmul_kernel,
            out_shape=jax.ShapeDtypeStruct((M, N), x2d.dtype),
            grid=grid,
            in_specs=[x_spec, w_spec],
            out_specs=o_spec,
            scratch_shapes=[pltpu.VMEM((tm, tn), jnp.float32)],
            compiler_params=cparams,
            cost_estimate=cost,
        )(x2d, w)

    b_spec = pl.BlockSpec((1, tn), lambda i, j, k: (0, j))
    return pl.pallas_call(
        _matmul_bias_kernel,
        out_shape=jax.ShapeDtypeStruct((M, N), x2d.dtype),
        grid=grid,
        in_specs=[x_spec, w_spec, b_spec],
        out_specs=o_spec,
        scratch_shapes=[pltpu.VMEM((tm, tn), jnp.float32)],
        compiler_params=cparams,
        cost_estimate=cost,
    )(x2d, w, b.reshape(1, N))


# --------------------------- flash-style causal attention ---------------------

def _flash_causal_attn_kernel(q_ref, k_ref, v_ref, o_ref,
                              m_scr, l_scr, acc_scr,
                              *, n_heads, head_dim, scale):
    # q_ref: (1, tq, C), k_ref/v_ref: (1, tkv, C), o_ref: (1, tq, C)
    # m_scr/l_scr: (n_heads, tq, 1) f32 ; acc_scr: (n_heads, tq, D) f32
    # (per-head slabs indexed on the leading axis -> no partial-lane scratch stores)
    qi = pl.program_id(1)
    ki = pl.program_id(2)

    @pl.when(ki == 0)
    def _init():
        m_scr[...] = jnp.full_like(m_scr, -jnp.inf)
        l_scr[...] = jnp.zeros_like(l_scr)
        acc_scr[...] = jnp.zeros_like(acc_scr)

    def accumulate(masked):
        q = q_ref[0] * scale      # fold 1/sqrt(D) into q once per block (tq, C)
        k = k_ref[0]              # (tkv, C)
        v = v_ref[0]              # (tkv, C)

        if masked:
            # Only the diagonal block is masked; with tq == tkv the row/col grid
            # offsets cancel, so a purely local triangular mask is exact.
            tq, tkv = q.shape[0], k.shape[0]
            row = jax.lax.broadcasted_iota(jnp.int32, (tq, tkv), 0)
            col = jax.lax.broadcasted_iota(jnp.int32, (tq, tkv), 1)
            causal = col <= row

        # Static Python loop over heads: static lane slices of the packed-C block.
        for h in range(n_heads):
            lo = h * head_dim
            hi = lo + head_dim
            # q_h @ k_h^T without materializing a transposed copy.
            s = jax.lax.dot_general(
                q[:, lo:hi], k[:, lo:hi],
                (((1,), (1,)), ((), ())),
                preferred_element_type=jnp.float32)              # (tq, tkv) f32
            if masked:
                s = jnp.where(causal, s, -1e30)                  # finite, NaN-safe

            m_prev = m_scr[h]                                    # (tq, 1)
            m_new = jnp.maximum(m_prev, jnp.max(s, axis=-1, keepdims=True))
            alpha = jnp.exp(m_prev - m_new)
            p = jnp.exp(s - m_new)
            l_scr[h] = alpha * l_scr[h] + jnp.sum(p, axis=-1, keepdims=True)
            acc_scr[h] = alpha * acc_scr[h] + jnp.dot(
                p.astype(v.dtype), v[:, lo:hi],
                preferred_element_type=jnp.float32)
            m_scr[h] = m_new

    # Equal Q/KV tiles => three regimes:
    #   ki  < qi : fully below the diagonal -> unmasked fast path
    #   ki == qi : diagonal block           -> triangular mask
    #   ki  > qi : above the diagonal       -> skipped entirely
    @pl.when(ki < qi)
    def _below():
        accumulate(masked=False)

    @pl.when(ki == qi)
    def _diag():
        accumulate(masked=True)

    @pl.when(ki == pl.num_programs(2) - 1)
    def _finalize():
        outs = []
        for h in range(n_heads):
            # exact division keeps the strict correctness tolerance; every causal
            # row has >= 1 unmasked key so l > 0.
            outs.append(acc_scr[h] / l_scr[h])
        # single lane-dense (tq, C) store
        o_ref[0] = jnp.concatenate(outs, axis=-1).astype(o_ref.dtype)


def pallas_causal_attention(q, k, v, n_heads, *, tq_target=128):
    """q, k, v: (B, T, C) with heads packed in C -> (B, T, C) causal attention."""
    B, T, C = q.shape
    assert C % n_heads == 0
    D = C // n_heads
    scale = 1.0 / sqrt(D)

    tq = _pick_tile(T, tq_target)
    tkv = tq   # equal Q/KV tiles => only the diagonal block needs masking
    grid = (B, T // tq, T // tkv)

    q_spec = pl.BlockSpec((1, tq, C), lambda b, i, j: (b, i, 0))
    kv_spec = pl.BlockSpec((1, tkv, C), lambda b, i, j: (b, j, 0))
    o_spec = pl.BlockSpec((1, tq, C), lambda b, i, j: (b, i, 0))

    kernel = functools.partial(
        _flash_causal_attn_kernel,
        n_heads=n_heads, head_dim=D, scale=scale)

    itemsize = jnp.dtype(q.dtype).itemsize
    cost = pl.CostEstimate(
        flops=4 * B * n_heads * T * T * D,       # QK^T + PV (causal skip ~halves this)
        transcendentals=B * n_heads * T * T,     # exp
        bytes_accessed=4 * B * T * C * itemsize,
    )

    return pl.pallas_call(
        kernel,
        out_shape=jax.ShapeDtypeStruct((B, T, C), q.dtype),
        grid=grid,
        in_specs=[q_spec, kv_spec, kv_spec],
        out_specs=o_spec,
        scratch_shapes=[
            pltpu.VMEM((n_heads, tq, 1), jnp.float32),   # running max m
            pltpu.VMEM((n_heads, tq, 1), jnp.float32),   # running sum l
            pltpu.VMEM((n_heads, tq, D), jnp.float32),   # unnormalized output acc
        ],
        compiler_params=pltpu.CompilerParams(
            dimension_semantics=("parallel", "parallel", "arbitrary")),
        cost_estimate=cost,
    )(q, k, v)


# --------------------------- forward ------------------------------------------

def multi_head_attention_forward(x, params, n_heads):
    """Replicates MultiHeadAttention.forward (eval mode, causal mask).

    Expects weights pre-transposed to (in_features, out_features) layout
    ("w_qkv_t", "w_out_t") so no transposed copy is materialized per call, and
    keeps heads packed in C throughout (no (B,H,T,D) transposes)."""
    B, T, C = x.shape
    x2d = x.reshape(B * T, C)

    qkv = pallas_linear(x2d, params["w_qkv_t"])        # (B*T, 3C), no bias
    qkv = qkv.reshape(B, T, 3 * C)
    q = qkv[..., :C]
    k = qkv[..., C:2 * C]
    v = qkv[..., 2 * C:]                               # each (B, T, C), heads packed in C

    o = pallas_causal_attention(q, k, v, n_heads)      # (B, T, C) -- already out-proj layout

    y = pallas_linear(o.reshape(B * T, C), params["w_out_t"], params["b_out"])
    return y.reshape(B, T, C)


# --------------------------- reference (pure JAX) ------------------------------

def reference_forward(x, params, n_heads):
    B, T, C = x.shape
    D = C // n_heads
    qkv = x @ params["w_qkv"].T
    q, k, v = jnp.split(qkv, 3, axis=-1)
    q = q.reshape(B, T, n_heads, D).transpose(0, 2, 1, 3)
    k = k.reshape(B, T, n_heads, D).transpose(0, 2, 1, 3)
    v = v.reshape(B, T, n_heads, D).transpose(0, 2, 1, 3)
    s = (q @ jnp.swapaxes(k, -2, -1)) / sqrt(D)
    mask = jnp.tril(jnp.ones((T, T)))
    s = jnp.where(mask == 0, -jnp.inf, s)
    p = jax.nn.softmax(s, axis=-1)
    o = (p @ v).transpose(0, 2, 1, 3).reshape(B, T, C)
    return o @ params["w_out"].T + params["b_out"]


# --------------------------- main ----------------------------------------------

if __name__ == "__main__":
    B, T, C, H = 2, 8, 32, 4   # batch, seq (n_ctx), d_model, n_heads

    key = jax.random.PRNGKey(0)
    kx, kq, kw, kb = jax.random.split(key, 4)

    x = jax.random.normal(kx, (B, T, C), dtype=jnp.float32)
    torch_params = {
        # PyTorch Linear weight layout: (out_features, in_features)
        "w_qkv": jax.random.normal(kq, (3 * C, C), dtype=jnp.float32) * (1.0 / sqrt(C)),
        "w_out": jax.random.normal(kw, (C, C), dtype=jnp.float32) * (1.0 / sqrt(C)),
        "b_out": jax.random.normal(kb, (C,), dtype=jnp.float32) * 0.01,
    }
    # Pre-transpose weights ONCE (outside the per-step forward) to (in, out) layout.
    run_params = {
        "w_qkv_t": jnp.asarray(torch_params["w_qkv"].T),
        "w_out_t": jnp.asarray(torch_params["w_out"].T),
        "b_out": torch_params["b_out"],
    }

    fwd = jax.jit(functools.partial(multi_head_attention_forward, n_heads=H))
    out = jax.block_until_ready(fwd(x, run_params))

    ref = reference_forward(x, torch_params, H)
    assert out.shape == (B, T, C)
    assert jnp.allclose(out, ref, atol=1e-4, rtol=1e-4), "mismatch vs reference"

    print("KERNEL_OK")
</pallas_src>

<mosaic_0001>
module attributes {stable_mosaic.version = 11 : i64} {
  func.func @_matmul_bias_kernel(%arg0: i32, %arg1: i32, %arg2: i32, %arg3: memref<16x32xf32, #tpu.memory_space<vmem>>, %arg4: memref<32x32xf32, #tpu.memory_space<vmem>>, %arg5: memref<1x32xf32, #tpu.memory_space<vmem>>, %arg6: memref<16x32xf32, #tpu.memory_space<vmem>>, %arg7: memref<16x32xf32, #tpu.memory_space<vmem>>) attributes {dimension_semantics = [#tpu.dimension_semantics<parallel>, #tpu.dimension_semantics<parallel>, #tpu.dimension_semantics<arbitrary>], iteration_bounds = array<i64: 1, 1, 1>, scalar_prefetch = 0 : i64, scratch_operands = 1 : i64, tpu.core_type = #tpu.core_type<tc>, window_params = [{transform_indices = @transform_0, window_bounds = array<i64: 16, 32>}, {transform_indices = @transform_1, window_bounds = array<i64: 32, 32>}, {transform_indices = @transform_2, window_bounds = array<i64: 1, 32>}, {transform_indices = @transform_3, window_bounds = array<i64: 16, 32>}]} {
    %c0_i32 = arith.constant 0 : i32
    %0 = arith.cmpi eq, %arg2, %c0_i32 : i32
    %1 = arith.extui %0 : i1 to i32
    %c0_i32_0 = arith.constant 0 : i32
    %2 = arith.cmpi ne, %1, %c0_i32_0 : i32
    scf.if %2 {
      %cst_10 = arith.constant 0.000000e+00 : f32
      %12 = vector.broadcast %cst_10 : f32 to vector<16x32xf32>
      %c0_11 = arith.constant 0 : index
      %c0_12 = arith.constant 0 : index
      %13 = vector.load %arg7[%c0_11, %c0_12] : memref<16x32xf32, #tpu.memory_space<vmem>>, vector<16x32xf32>
      tpu.vector_store %arg7[%c0_11, %c0_12], %12 {strides = array<i32>} : memref<16x32xf32, #tpu.memory_space<vmem>>, vector<16x32xf32>,
    } else {
    }
    %c0 = arith.constant 0 : index
    %c0_1 = arith.constant 0 : index
    %3 = vector.load %arg7[%c0, %c0_1] : memref<16x32xf32, #tpu.memory_space<vmem>>, vector<16x32xf32>
    %c0_2 = arith.constant 0 : index
    %c0_3 = arith.constant 0 : index
    %4 = vector.load %arg3[%c0_2, %c0_3] : memref<16x32xf32, #tpu.memory_space<vmem>>, vector<16x32xf32>
    %c0_4 = arith.constant 0 : index
    %c0_5 = arith.constant 0 : index
    %5 = vector.load %arg4[%c0_4, %c0_5] : memref<32x32xf32, #tpu.memory_space<vmem>>, vector<32x32xf32>
    %cst = arith.constant dense<0.000000e+00> : vector<16x32xf32>
    %6 = tpu.matmul %4, %5, %cst {dimension_numbers = #tpu.dot_dimension_numbers<[1], [0], [0], [1], [0, 0, 1, 1], [], []>} : vector<16x32xf32>, vector<32x32xf32>, vector<16x32xf32> -> vector<16x32xf32>
    %7 = arith.addf %3, %6 : vector<16x32xf32>
    %c0_6 = arith.constant 0 : index
    %c0_7 = arith.constant 0 : index
    %8 = vector.load %arg7[%c0_6, %c0_7] : memref<16x32xf32, #tpu.memory_space<vmem>>, vector<16x32xf32>
    tpu.vector_store %arg7[%c0_6, %c0_7], %7 {strides = array<i32>} : memref<16x32xf32, #tpu.memory_space<vmem>>, vector<16x32xf32>,
    %c0_i32_8 = arith.constant 0 : i32
    %9 = arith.cmpi eq, %arg2, %c0_i32_8 : i32
    %10 = arith.extui %9 : i1 to i32
    %c0_i32_9 = arith.constant 0 : i32
    %11 = arith.cmpi ne, %10, %c0_i32_9 : i32
    scf.if %11 {
      %c0_10 = arith.constant 0 : index
      %c0_11 = arith.constant 0 : index
      %12 = vector.load %arg7[%c0_10, %c0_11] : memref<16x32xf32, #tpu.memory_space<vmem>>, vector<16x32xf32>
      %c0_12 = arith.constant 0 : index
      %c0_13 = arith.constant 0 : index
      %13 = vector.load %arg5[%c0_12, %c0_13] : memref<1x32xf32, #tpu.memory_space<vmem>>, vector<1x32xf32>
      %14 = vector.broadcast %13 : vector<1x32xf32> to vector<16x32xf32>
      %15 = arith.addf %12, %14 : vector<16x32xf32>
      %c0_14 = arith.constant 0 : index
      %c0_15 = arith.constant 0 : index
      %16 = vector.load %arg6[%c0_14, %c0_15] : memref<16x32xf32, #tpu.memory_space<vmem>>, vector<16x32xf32>
      tpu.vector_store %arg6[%c0_14, %c0_15], %15 {strides = array<i32>} : memref<16x32xf32, #tpu.memory_space<vmem>>, vector<16x32xf32>,
    } else {
    }
    return
  }
  func.func @transform_0(%arg0: i32, %arg1: i32, %arg2: i32) -> (i32, i32) {
    %c0_i32 = arith.constant 0 : i32
    return %arg0, %arg2 : i32, i32
  }
  func.func @transform_1(%arg0: i32, %arg1: i32, %arg2: i32) -> (i32, i32) {
    %c0_i32 = arith.constant 0 : i32
    return %arg2, %arg1 : i32, i32
  }
  func.func @transform_2(%arg0: i32, %arg1: i32, %arg2: i32) -> (i32, i32) {
    %c0_i32 = arith.constant 0 : i32
    %c0_i32_0 = arith.constant 0 : i32
    return %c0_i32, %arg1 : i32, i32
  }
  func.func @transform_3(%arg0: i32, %arg1: i32, %arg2: i32) -> (i32, i32) {
    %c0_i32 = arith.constant 0 : i32
    return %arg0, %arg1 : i32, i32
  }
}

module attributes {stable_mosaic.version = 11 : i64} {
  func.func @_matmul_kernel(%arg0: i32, %arg1: i32, %arg2: i32, %arg3: memref<16x32xf32, #tpu.memory_space<vmem>>, %arg4: memref<32x96xf32, #tpu.memory_space<vmem>>, %arg5: memref<16x96xf32, #tpu.memory_space<vmem>>, %arg6: memref<16x96xf32, #tpu.memory_space<vmem>>) attributes {dimension_semantics = [#tpu.dimension_semantics<parallel>, #tpu.dimension_semantics<parallel>, #tpu.dimension_semantics<arbitrary>], iteration_bounds = array<i64: 1, 1, 1>, scalar_prefetch = 0 : i64, scratch_operands = 1 : i64, tpu.core_type = #tpu.core_type<tc>, window_params = [{transform_indices = @transform_0, window_bounds = array<i64: 16, 32>}, {transform_indices = @transform_1, window_bounds = array<i64: 32, 96>}, {transform_indices = @transform_2, window_bounds = array<i64: 16, 96>}]} {
    %c0_i32 = arith.constant 0 : i32
    %0 = arith.cmpi eq, %arg2, %c0_i32 : i32
    %1 = arith.extui %0 : i1 to i32
    %c0_i32_0 = arith.constant 0 : i32
    %2 = arith.cmpi ne, %1, %c0_i32_0 : i32
    scf.if %2 {
      %cst_10 = arith.constant 0.000000e+00 : f32
      %12 = vector.broadcast %cst_10 : f32 to vector<16x96xf32>
      %c0_11 = arith.constant 0 : index
      %c0_12 = arith.constant 0 : index
      %13 = vector.load %arg6[%c0_11, %c0_12] : memref<16x96xf32, #tpu.memory_space<vmem>>, vector<16x96xf32>
      tpu.vector_store %arg6[%c0_11, %c0_12], %12 {strides = array<i32>} : memref<16x96xf32, #tpu.memory_space<vmem>>, vector<16x96xf32>,
    } else {
    }
    %c0 = arith.constant 0 : index
    %c0_1 = arith.constant 0 : index
    %3 = vector.load %arg6[%c0, %c0_1] : memref<16x96xf32, #tpu.memory_space<vmem>>, vector<16x96xf32>
    %c0_2 = arith.constant 0 : index
    %c0_3 = arith.constant 0 : index
    %4 = vector.load %arg3[%c0_2, %c0_3] : memref<16x32xf32, #tpu.memory_space<vmem>>, vector<16x32xf32>
    %c0_4 = arith.constant 0 : index
    %c0_5 = arith.constant 0 : index
    %5 = vector.load %arg4[%c0_4, %c0_5] : memref<32x96xf32, #tpu.memory_space<vmem>>, vector<32x96xf32>
    %cst = arith.constant dense<0.000000e+00> : vector<16x96xf32>
    %6 = tpu.matmul %4, %5, %cst {dimension_numbers = #tpu.dot_dimension_numbers<[1], [0], [0], [1], [0, 0, 1, 1], [], []>} : vector<16x32xf32>, vector<32x96xf32>, vector<16x96xf32> -> vector<16x96xf32>
    %7 = arith.addf %3, %6 : vector<16x96xf32>
    %c0_6 = arith.constant 0 : index
    %c0_7 = arith.constant 0 : index
    %8 = vector.load %arg6[%c0_6, %c0_7] : memref<16x96xf32, #tpu.memory_space<vmem>>, vector<16x96xf32>
    tpu.vector_store %arg6[%c0_6, %c0_7], %7 {strides = array<i32>} : memref<16x96xf32, #tpu.memory_space<vmem>>, vector<16x96xf32>,
    %c0_i32_8 = arith.constant 0 : i32
    %9 = arith.cmpi eq, %arg2, %c0_i32_8 : i32
    %10 = arith.extui %9 : i1 to i32
    %c0_i32_9 = arith.constant 0 : i32
    %11 = arith.cmpi ne, %10, %c0_i32_9 : i32
    scf.if %11 {
      %c0_10 = arith.constant 0 : index
      %c0_11 = arith.constant 0 : index
      %12 = vector.load %arg6[%c0_10, %c0_11] : memref<16x96xf32, #tpu.memory_space<vmem>>, vector<16x96xf32>
      %c0_12 = arith.constant 0 : index
      %c0_13 = arith.constant 0 : index
      %13 = vector.load %arg5[%c0_12, %c0_13] : memref<16x96xf32, #tpu.memory_space<vmem>>, vector<16x96xf32>
      tpu.vector_store %arg5[%c0_12, %c0_13], %12 {strides = array<i32>} : memref<16x96xf32, #tpu.memory_space<vmem>>, vector<16x96xf32>,
    } else {
    }
    return
  }
  func.func @transform_0(%arg0: i32, %arg1: i32, %arg2: i32) -> (i32, i32) {
    %c0_i32 = arith.constant 0 : i32
    return %arg0, %arg2 : i32, i32
  }
  func.func @transform_1(%arg0: i32, %arg1: i32, %arg2: i32) -> (i32, i32) {
    %c0_i32 = arith.constant 0 : i32
    return %arg2, %arg1 : i32, i32
  }
  func.func @transform_2(%arg0: i32, %arg1: i32, %arg2: i32) -> (i32, i32) {
    %c0_i32 = arith.constant 0 : i32
    return %arg0, %arg1 : i32, i32
  }
}

module attributes {stable_mosaic.version = 11 : i64} {
  func.func @_flash_causal_attn_kernel(%arg0: i32, %arg1: i32, %arg2: i32, %arg3: memref<1x8x32xf32, #tpu.memory_space<vmem>>, %arg4: memref<1x8x32xf32, #tpu.memory_space<vmem>>, %arg5: memref<1x8x32xf32, #tpu.memory_space<vmem>>, %arg6: memref<1x8x32xf32, #tpu.memory_space<vmem>>, %arg7: memref<4x8x1xf32, #tpu.memory_space<vmem>>, %arg8: memref<4x8x1xf32, #tpu.memory_space<vmem>>, %arg9: memref<4x8x8xf32, #tpu.memory_space<vmem>>) attributes {dimension_semantics = [#tpu.dimension_semantics<parallel>, #tpu.dimension_semantics<parallel>, #tpu.dimension_semantics<arbitrary>], iteration_bounds = array<i64: 2, 1, 1>, scalar_prefetch = 0 : i64, scratch_operands = 3 : i64, tpu.core_type = #tpu.core_type<tc>, window_params = [{transform_indices = @transform_0, window_bounds = array<i64: 1, 8, 32>}, {transform_indices = @transform_1, window_bounds = array<i64: 1, 8, 32>}, {transform_indices = @transform_2, window_bounds = array<i64: 1, 8, 32>}, {transform_indices = @transform_3, window_bounds = array<i64: 1, 8, 32>}]} {
    %c0_i32 = arith.constant 0 : i32
    %0 = arith.cmpi eq, %arg2, %c0_i32 : i32
    %1 = arith.extui %0 : i1 to i32
    %c0_i32_0 = arith.constant 0 : i32
    %2 = arith.cmpi ne, %1, %c0_i32_0 : i32
    scf.if %2 {
      %cst = arith.constant 0xFF800000 : f32
      %12 = vector.broadcast %cst : f32 to vector<4x8x1xf32>
      %c0 = arith.constant 0 : index
      %c0_5 = arith.constant 0 : index
      %c0_6 = arith.constant 0 : index
      %13 = vector.load %arg7[%c0, %c0_5, %c0_6] : memref<4x8x1xf32, #tpu.memory_space<vmem>>, vector<4x8x1xf32>
      tpu.vector_store %arg7[%c0, %c0_5, %c0_6], %12 {strides = array<i32>} : memref<4x8x1xf32, #tpu.memory_space<vmem>>, vector<4x8x1xf32>,
      %cst_7 = arith.constant 0.000000e+00 : f32
      %14 = vector.broadcast %cst_7 : f32 to vector<4x8x1xf32>
      %c0_8 = arith.constant 0 : index
      %c0_9 = arith.constant 0 : index
      %c0_10 = arith.constant 0 : index
      %15 = vector.load %arg8[%c0_8, %c0_9, %c0_10] : memref<4x8x1xf32, #tpu.memory_space<vmem>>, vector<4x8x1xf32>
      tpu.vector_store %arg8[%c0_8, %c0_9, %c0_10], %14 {strides = array<i32>} : memref<4x8x1xf32, #tpu.memory_space<vmem>>, vector<4x8x1xf32>,
      %cst_11 = arith.constant 0.000000e+00 : f32
      %16 = vector.broadcast %cst_11 : f32 to vector<4x8x8xf32>
      %c0_12 = arith.constant 0 : index
      %c0_13 = arith.constant 0 : index
      %c0_14 = arith.constant 0 : index
      %17 = vector.load %arg9[%c0_12, %c0_13, %c0_14] : memref<4x8x8xf32, #tpu.memory_space<vmem>>, vector<4x8x8xf32>
      tpu.vector_store %arg9[%c0_12, %c0_13, %c0_14], %16 {strides = array<i32>} : memref<4x8x8xf32, #tpu.memory_space<vmem>>, vector<4x8x8xf32>,
    } else {
    }
    %3 = arith.cmpi slt, %arg2, %arg1 : i32
    %4 = arith.extui %3 : i1 to i32
    %c0_i32_1 = arith.constant 0 : i32
    %5 = arith.cmpi ne, %4, %c0_i32_1 : i32
    scf.if %5 {
      %c0 = arith.constant 0 : index
      %c0_5 = arith.constant 0 : index
      %c0_6 = arith.constant 0 : index
      %12 = vector.load %arg3[%c0, %c0_5, %c0_6] : memref<1x8x32xf32, #tpu.memory_space<vmem>>, vector<1x8x32xf32>
      %13 = vector.shape_cast %12 : vector<1x8x32xf32> to vector<8x32xf32>
      %cst = arith.constant 0.353553385 : f32
      %14 = vector.broadcast %cst : f32 to vector<8x32xf32>
      %15 = arith.mulf %13, %14 : vector<8x32xf32>
      %c0_7 = arith.constant 0 : index
      %c0_8 = arith.constant 0 : index
      %c0_9 = arith.constant 0 : index
      %16 = vector.load %arg4[%c0_7, %c0_8, %c0_9] : memref<1x8x32xf32, #tpu.memory_space<vmem>>, vector<1x8x32xf32>
      %17 = vector.shape_cast %16 : vector<1x8x32xf32> to vector<8x32xf32>
      %c0_10 = arith.constant 0 : index
      %c0_11 = arith.constant 0 : index
      %c0_12 = arith.constant 0 : index
      %18 = vector.load %arg5[%c0_10, %c0_11, %c0_12] : memref<1x8x32xf32, #tpu.memory_space<vmem>>, vector<1x8x32xf32>
      %19 = vector.shape_cast %18 : vector<1x8x32xf32> to vector<8x32xf32>
      %20 = vector.extract_strided_slice %15 {offsets = [0, 0], sizes = [8, 8], strides = [1, 1]} : vector<8x32xf32> to vector<8x8xf32>
      %21 = vector.extract_strided_slice %17 {offsets = [0, 0], sizes = [8, 8], strides = [1, 1]} : vector<8x32xf32> to vector<8x8xf32>
      %cst_13 = arith.constant dense<0.000000e+00> : vector<8x8xf32>
      %22 = tpu.matmul %20, %21, %cst_13 {dimension_numbers = #tpu.dot_dimension_numbers<[1], [1], [0], [0], [0, 0, 1, 0], [], []>} : vector<8x8xf32>, vector<8x8xf32>, vector<8x8xf32> -> vector<8x8xf32>
      %c0_14 = arith.constant 0 : index
      %c0_15 = arith.constant 0 : index
      %c0_16 = arith.constant 0 : index
      %23 = vector.load %arg7[%c0_14, %c0_15, %c0_16] : memref<4x8x1xf32, #tpu.memory_space<vmem>>, vector<1x8x1xf32>
      %24 = vector.shape_cast %23 : vector<1x8x1xf32> to vector<8x1xf32>
      %cst_17 = arith.constant dense<0xFF800000> : vector<8xf32>
      %25 = vector.multi_reduction <maximumf>, %22, %cst_17 [1] : vector<8x8xf32> to vector<8xf32>
      %26 = vector.shape_cast %25 : vector<8xf32> to vector<8x1xf32>
      %27 = arith.maximumf %24, %26 : vector<8x1xf32>
      %28 = arith.subf %24, %27 : vector<8x1xf32>
      %29 = math.exp %28 : vector<8x1xf32>
      %30 = vector.broadcast %27 : vector<8x1xf32> to vector<8x8xf32>
      %31 = arith.subf %22, %30 : vector<8x8xf32>
      %32 = math.exp %31 : vector<8x8xf32>
      %c0_18 = arith.constant 0 : index
      %c0_19 = arith.constant 0 : index
      %c0_20 = arith.constant 0 : index
      %33 = vector.load %arg8[%c0_18, %c0_19, %c0_20] : memref<4x8x1xf32, #tpu.memory_space<vmem>>, vector<1x8x1xf32>
      %34 = vector.shape_cast %33 : vector<1x8x1xf32> to vector<8x1xf32>
      %35 = arith.mulf %29, %34 : vector<8x1xf32>
      %cst_21 = arith.constant dense<0.000000e+00> : vector<8xf32>
      %36 = vector.multi_reduction <add>, %32, %cst_21 [1] : vector<8x8xf32> to vector<8xf32>
      %37 = vector.shape_cast %36 : vector<8xf32> to vector<8x1xf32>
      %38 = arith.addf %35, %37 : vector<8x1xf32>
      %c0_22 = arith.constant 0 : index
      %c0_23 = arith.constant 0 : index
      %c0_24 = arith.constant 0 : index
      %39 = vector.load %arg8[%c0_22, %c0_23, %c0_24] : memref<4x8x1xf32, #tpu.memory_space<vmem>>, vector<1x8x1xf32>
      %40 = vector.shape_cast %39 : vector<1x8x1xf32> to vector<8x1xf32>
      %41 = vector.shape_cast %38 : vector<8x1xf32> to vector<1x8x1xf32>
      tpu.vector_store %arg8[%c0_22, %c0_23, %c0_24], %41 {strides = array<i32>} : memref<4x8x1xf32, #tpu.memory_space<vmem>>, vector<1x8x1xf32>,
      %c0_25 = arith.constant 0 : index
      %c0_26 = arith.constant 0 : index
      %c0_27 = arith.constant 0 : index
      %42 = vector.load %arg9[%c0_25, %c0_26, %c0_27] : memref<4x8x8xf32, #tpu.memory_space<vmem>>, vector<1x8x8xf32>
      %43 = vector.shape_cast %42 : vector<1x8x8xf32> to vector<8x8xf32>
      %44 = vector.broadcast %29 : vector<8x1xf32> to vector<8x8xf32>
      %45 = arith.mulf %44, %43 : vector<8x8xf32>
      %46 = vector.extract_strided_slice %19 {offsets = [0, 0], sizes = [8, 8], strides = [1, 1]} : vector<8x32xf32> to vector<8x8xf32>
      %cst_28 = arith.constant dense<0.000000e+00> : vector<8x8xf32>
      %47 = tpu.matmul %32, %46, %cst_28 {dimension_numbers = #tpu.dot_dimension_numbers<[1], [0], [0], [1], [0, 0, 1, 1], [], []>} : vector<8x8xf32>, vector<8x8xf32>, vector<8x8xf32> -> vector<8x8xf32>
      %48 = arith.addf %45, %47 : vector<8x8xf32>
      %c0_29 = arith.constant 0 : index
      %c0_30 = arith.constant 0 : index
      %c0_31 = arith.constant 0 : index
      %49 = vector.load %arg9[%c0_29, %c0_30, %c0_31] : memref<4x8x8xf32, #tpu.memory_space<vmem>>, vector<1x8x8xf32>
      %50 = vector.shape_cast %49 : vector<1x8x8xf32> to vector<8x8xf32>
      %51 = vector.shape_cast %48 : vector<8x8xf32> to vector<1x8x8xf32>
      tpu.vector_store %arg9[%c0_29, %c0_30, %c0_31], %51 {strides = array<i32>} : memref<4x8x8xf32, #tpu.memory_space<vmem>>, vector<1x8x8xf32>,
      %c0_32 = arith.constant 0 : index
      %c0_33 = arith.constant 0 : index
      %c0_34 = arith.constant 0 : index
      %52 = vector.load %arg7[%c0_32, %c0_33, %c0_34] : memref<4x8x1xf32, #tpu.memory_space<vmem>>, vector<1x8x1xf32>
      %53 = vector.shape_cast %52 : vector<1x8x1xf32> to vector<8x1xf32>
      %54 = vector.shape_cast %27 : vector<8x1xf32> to vector<1x8x1xf32>
      tpu.vector_store %arg7[%c0_32, %c0_33, %c0_34], %54 {strides = array<i32>} : memref<4x8x1xf32, #tpu.memory_space<vmem>>, vector<1x8x1xf32>,
      %55 = vector.extract_strided_slice %15 {offsets = [0, 8], sizes = [8, 8], strides = [1, 1]} : vector<8x32xf32> to vector<8x8xf32>
      %56 = vector.extract_strided_slice %17 {offsets = [0, 8], sizes = [8, 8], strides = [1, 1]} : vector<8x32xf32> to vector<8x8xf32>
      %cst_35 = arith.constant dense<0.000000e+00> : vector<8x8xf32>
      %57 = tpu.matmul %55, %56, %cst_35 {dimension_numbers = #tpu.dot_dimension_numbers<[1], [1], [0], [0], [0, 0, 1, 0], [], []>} : vector<8x8xf32>, vector<8x8xf32>, vector<8x8xf32> -> vector<8x8xf32>
      %c1 = arith.constant 1 : index
      %c0_36 = arith.constant 0 : index
      %c0_37 = arith.constant 0 : index
      %58 = vector.load %arg7[%c1, %c0_36, %c0_37] : memref<4x8x1xf32, #tpu.memory_space<vmem>>, vector<1x8x1xf32>
      %59 = vector.shape_cast %58 : vector<1x8x1xf32> to vector<8x1xf32>
      %cst_38 = arith.constant dense<0xFF800000> : vector<8xf32>
      %60 = vector.multi_reduction <maximumf>, %57, %cst_38 [1] : vector<8x8xf32> to vector<8xf32>
      %61 = vector.shape_cast %60 : vector<8xf32> to vector<8x1xf32>
      %62 = arith.maximumf %59, %61 : vector<8x1xf32>
      %63 = arith.subf %59, %62 : vector<8x1xf32>
      %64 = math.exp %63 : vector<8x1xf32>
      %65 = vector.broadcast %62 : vector<8x1xf32> to vector<8x8xf32>
      %66 = arith.subf %57, %65 : vector<8x8xf32>
      %67 = math.exp %66 : vector<8x8xf32>
      %c1_39 = arith.constant 1 : index
      %c0_40 = arith.constant 0 : index
      %c0_41 = arith.constant 0 : index
      %68 = vector.load %arg8[%c1_39, %c0_40, %c0_41] : memref<4x8x1xf32, #tpu.memory_space<vmem>>, vector<1x8x1xf32>
      %69 = vector.shape_cast %68 : vector<1x8x1xf32> to vector<8x1xf32>
      %70 = arith.mulf %64, %69 : vector<8x1xf32>
      %cst_42 = arith.constant dense<0.000000e+00> : vector<8xf32>
      %71 = vector.multi_reduction <add>, %67, %cst_42 [1] : vector<8x8xf32> to vector<8xf32>
      %72 = vector.shape_cast %71 : vector<8xf32> to vector<8x1xf32>
      %73 = arith.addf %70, %72 : vector<8x1xf32>
      %c1_43 = arith.constant 1 : index
      %c0_44 = arith.constant 0 : index
      %c0_45 = arith.constant 0 : index
      %74 = vector.load %arg8[%c1_43, %c0_44, %c0_45] : memref<4x8x1xf32, #tpu.memory_space<vmem>>, vector<1x8x1xf32>
      %75 = vector.shape_cast %74 : vector<1x8x1xf32> to vector<8x1xf32>
      %76 = vector.shape_cast %73 : vector<8x1xf32> to vector<1x8x1xf32>
      tpu.vector_store %arg8[%c1_43, %c0_44, %c0_45], %76 {strides = array<i32>} : memref<4x8x1xf32, #tpu.memory_space<vmem>>, vector<1x8x1xf32>,
      %c1_46 = arith.constant 1 : index
      %c0_47 = arith.constant 0 : index
      %c0_48 = arith.constant 0 : index
      %77 = vector.load %arg9[%c1_46, %c0_47, %c0_48] : memref<4x8x8xf32, #tpu.memory_space<vmem>>, vector<1x8x8xf32>
      %78 = vector.shape_cast %77 : vector<1x8x8xf32> to vector<8x8xf32>
      %79 = vector.broadcast %64 : vector<8x1xf32> to vector<8x8xf32>
      %80 = arith.mulf %79, %78 : vector<8x8xf32>
      %81 = vector.extract_strided_slice %19 {offsets = [0, 8], sizes = [8, 8], strides = [1, 1]} : vector<8x32xf32> to vector<8x8xf32>
      %cst_49 = arith.constant dense<0.000000e+00> : vector<8x8xf32>
      %82 = tpu.matmul %67, %81, %cst_49 {dimension_numbers = #tpu.dot_dimension_numbers<[1], [0], [0], [1], [0, 0, 1, 1], [], []>} : vector<8x8xf32>, vector<8x8xf32>, vector<8x8xf32> -> vector<8x8xf32>
      %83 = arith.addf %80, %82 : vector<8x8xf32>
      %c1_50 = arith.constant 1 : index
      %c0_51 = arith.constant 0 : index
      %c0_52 = arith.constant 0 : index
      %84 = vector.load %arg9[%c1_50, %c0_51, %c0_52] : memref<4x8x8xf32, #tpu.memory_space<vmem>>, vector<1x8x8xf32>
      %85 = vector.shape_cast %84 : vector<1x8x8xf32> to vector<8x8xf32>
      %86 = vector.shape_cast %83 : vector<8x8xf32> to vector<1x8x8xf32>
      tpu.vector_store %arg9[%c1_50, %c0_51, %c0_52], %86 {strides = array<i32>} : memref<4x8x8xf32, #tpu.memory_space<vmem>>, vector<1x8x8xf32>,
      %c1_53 = arith.constant 1 : index
      %c0_54 = arith.constant 0 : index
      %c0_55 = arith.constant 0 : index
      %87 = vector.load %arg7[%c1_53, %c0_54, %c0_55] : memref<4x8x1xf32, #tpu.memory_space<vmem>>, vector<1x8x1xf32>
      %88 = vector.shape_cast %87 : vector<1x8x1xf32> to vector<8x1xf32>
      %89 = vector.shape_cast %62 : vector<8x1xf32> to vector<1x8x1xf32>
      tpu.vector_store %arg7[%c1_53, %c0_54, %c0_55], %89 {strides = array<i32>} : memref<4x8x1xf32, #tpu.memory_space<vmem>>, vector<1x8x1xf32>,
      %90 = vector.extract_strided_slice %15 {offsets = [0, 16], sizes = [8, 8], strides = [1, 1]} : vector<8x32xf32> to vector<8x8xf32>
      %91 = vector.extract_strided_slice %17 {offsets = [0, 16], sizes = [8, 8], strides = [1, 1]} : vector<8x32xf32> to vector<8x8xf32>
      %cst_56 = arith.constant dense<0.000000e+00> : vector<8x8xf32>
      %92 = tpu.matmul %90, %91, %cst_56 {dimension_numbers = #tpu.dot_dimension_numbers<[1], [1], [0], [0], [0, 0, 1, 0], [], []>} : vector<8x8xf32>, vector<8x8xf32>, vector<8x8xf32> -> vector<8x8xf32>
      %c2 = arith.constant 2 : index
      %c0_57 = arith.constant 0 : index
      %c0_58 = arith.constant 0 : index
      %93 = vector.load %arg7[%c2, %c0_57, %c0_58] : memref<4x8x1xf32, #tpu.memory_space<vmem>>, vector<1x8x1xf32>
      %94 = vector.shape_cast %93 : vector<1x8x1xf32> to vector<8x1xf32>
      %cst_59 = arith.constant dense<0xFF800000> : vector<8xf32>
      %95 = vector.multi_reduction <maximumf>, %92, %cst_59 [1] : vector<8x8xf32> to vector<8xf32>
      %96 = vector.shape_cast %95 : vector<8xf32> to vector<8x1xf32>
      %97 = arith.maximumf %94, %96 : vector<8x1xf32>
      %98 = arith.subf %94, %97 : vector<8x1xf32>
      %99 = math.exp %98 : vector<8x1xf32>
      %100 = vector.broadcast %97 : vector<8x1xf32> to vector<8x8xf32>
      %101 = arith.subf %92, %100 : vector<8x8xf32>
      %102 = math.exp %101 : vector<8x8xf32>
      %c2_60 = arith.constant 2 : index
      %c0_61 = arith.constant 0 : index
      %c0_62 = arith.constant 0 : index
      %103 = vector.load %arg8[%c2_60, %c0_61, %c0_62] : memref<4x8x1xf32, #tpu.memory_space<vmem>>, vector<1x8x1xf32>
      %104 = vector.shape_cast %103 : vector<1x8x1xf32> to vector<8x1xf32>
      %105 = arith.mulf %99, %104 : vector<8x1xf32>
      %cst_63 = arith.constant dense<0.000000e+00> : vector<8xf32>
      %106 = vector.multi_reduction <add>, %102, %cst_63 [1] : vector<8x8xf32> to vector<8xf32>
      %107 = vector.shape_cast %106 : vector<8xf32> to vector<8x1xf32>
      %108 = arith.addf %105, %107 : vector<8x1xf32>
      %c2_64 = arith.constant 2 : index
      %c0_65 = arith.constant 0 : index
      %c0_66 = arith.constant 0 : index
      %109 = vector.load %arg8[%c2_64, %c0_65, %c0_66] : memref<4x8x1xf32, #tpu.memory_space<vmem>>, vector<1x8x1xf32>
      %110 = vector.shape_cast %109 : vector<1x8x1xf32> to vector<8x1xf32>
      %111 = vector.shape_cast %108 : vector<8x1xf32> to vector<1x8x1xf32>
      tpu.vector_store %arg8[%c2_64, %c0_65, %c0_66], %111 {strides = array<i32>} : memref<4x8x1xf32, #tpu.memory_space<vmem>>, vector<1x8x1xf32>,
      %c2_67 = arith.constant 2 : index
      %c0_68 = arith.constant 0 : index
      %c0_69 = arith.constant 0 : index
      %112 = vector.load %arg9[%c2_67, %c0_68, %c0_69] : memref<4x8x8xf32, #tpu.memory_space<vmem>>, vector<1x8x8xf32>
      %113 = vector.shape_cast %112 : vector<1x8x8xf32> to vector<8x8xf32>
      %114 = vector.broadcast %99 : vector<8x1xf32> to vector<8x8xf32>
      %115 = arith.mulf %114, %113 : vector<8x8xf32>
      %116 = vector.extract_strided_slice %19 {offsets = [0, 16], sizes = [8, 8], strides = [1, 1]} : vector<8x32xf32> to vector<8x8xf32>
      %cst_70 = arith.constant dense<0.000000e+00> : vector<8x8xf32>
      %117 = tpu.matmul %102, %116, %cst_70 {dimension_numbers = #tpu.dot_dimension_numbers<[1], [0], [0], [1], [0, 0, 1, 1], [], []>} : vector<8x8xf32>, vector<8x8xf32>, vector<8x8xf32> -> vector<8x8xf32>
      %118 = arith.addf %115, %117 : vector<8x8xf32>
      %c2_71 = arith.constant 2 : index
      %c0_72 = arith.constant 0 : index
      %c0_73 = arith.constant 0 : index
      %119 = vector.load %arg9[%c2_71, %c0_72, %c0_73] : memref<4x8x8xf32, #tpu.memory_space<vmem>>, vector<1x8x8xf32>
      %120 = vector.shape_cast %119 : vector<1x8x8xf32> to vector<8x8xf32>
      %121 = vector.shape_cast %118 : vector<8x8xf32> to vector<1x8x8xf32>
      tpu.vector_store %arg9[%c2_71, %c0_72, %c0_73], %121 {strides = array<i32>} : memref<4x8x8xf32, #tpu.memory_space<vmem>>, vector<1x8x8xf32>,
      %c2_74 = arith.constant 2 : index
      %c0_75 = arith.constant 0 : index
      %c0_76 = arith.constant 0 : index
      %122 = vector.load %arg7[%c2_74, %c0_75, %c0_76] : memref<4x8x1xf32, #tpu.memory_space<vmem>>, vector<1x8x1xf32>
      %123 = vector.shape_cast %122 : vector<1x8x1xf32> to vector<8x1xf32>
      %124 = vector.shape_cast %97 : vector<8x1xf32> to vector<1x8x1xf32>
      tpu.vector_store %arg7[%c2_74, %c0_75, %c0_76], %124 {strides = array<i32>} : memref<4x8x1xf32, #tpu.memory_space<vmem>>, vector<1x8x1xf32>,
      %125 = vector.extract_strided_slice %15 {offsets = [0, 24], sizes = [8, 8], strides = [1, 1]} : vector<8x32xf32> to vector<8x8xf32>
      %126 = vector.extract_strided_slice %17 {offsets = [0, 24], sizes = [8, 8], strides = [1, 1]} : vector<8x32xf32> to vector<8x8xf32>
      %cst_77 = arith.constant dense<0.000000e+00> : vector<8x8xf32>
      %127 = tpu.matmul %125, %126, %cst_77 {dimension_numbers = #tpu.dot_dimension_numbers<[1], [1], [0], [0], [0, 0, 1, 0], [], []>} : vector<8x8xf32>, vector<8x8xf32>, vector<8x8xf32> -> vector<8x8xf32>
      %c3 = arith.constant 3 : index
      %c0_78 = arith.constant 0 : index
      %c0_79 = arith.constant 0 : index
      %128 = vector.load %arg7[%c3, %c0_78, %c0_79] : memref<4x8x1xf32, #tpu.memory_space<vmem>>, vector<1x8x1xf32>
      %129 = vector.shape_cast %128 : vector<1x8x1xf32> to vector<8x1xf32>
      %cst_80 = arith.constant dense<0xFF800000> : vector<8xf32>
      %130 = vector.multi_reduction <maximumf>, %127, %cst_80 [1] : vector<8x8xf32> to vector<8xf32>
      %131 = vector.shape_cast %130 : vector<8xf32> to vector<8x1xf32>
      %132 = arith.maximumf %129, %131 : vector<8x1xf32>
      %133 = arith.subf %129, %132 : vector<8x1xf32>
      %134 = math.exp %133 : vector<8x1xf32>
      %135 = vector.broadcast %132 : vector<8x1xf32> to vector<8x8xf32>
      %136 = arith.subf %127, %135 : vector<8x8xf32>
      %137 = math.exp %136 : vector<8x8xf32>
      %c3_81 = arith.constant 3 : index
      %c0_82 = arith.constant 0 : index
      %c0_83 = arith.constant 0 : index
      %138 = vector.load %arg8[%c3_81, %c0_82, %c0_83] : memref<4x8x1xf32, #tpu.memory_space<vmem>>, vector<1x8x1xf32>
      %139 = vector.shape_cast %138 : vector<1x8x1xf32> to vector<8x1xf32>
      %140 = arith.mulf %134, %139 : vector<8x1xf32>
      %cst_84 = arith.constant dense<0.000000e+00> : vector<8xf32>
      %141 = vector.multi_reduction <add>, %137, %cst_84 [1] : vector<8x8xf32> to vector<8xf32>
      %142 = vector.shape_cast %141 : vector<8xf32> to vector<8x1xf32>
      %143 = arith.addf %140, %142 : vector<8x1xf32>
      %c3_85 = arith.constant 3 : index
      %c0_86 = arith.constant 0 : index
      %c0_87 = arith.constant 0 : index
      %144 = vector.load %arg8[%c3_85, %c0_86, %c0_87] : memref<4x8x1xf32, #tpu.memory_space<vmem>>, vector<1x8x1xf32>
      %145 = vector.shape_cast %144 : vector<1x8x1xf32> to vector<8x1xf32>
      %146 = vector.shape_cast %143 : vector<8x1xf32> to vector<1x8x1xf32>
      tpu.vector_store %arg8[%c3_85, %c0_86, %c0_87], %146 {strides = array<i32>} : memref<4x8x1xf32, #tpu.memory_space<vmem>>, vector<1x8x1xf32>,
      %c3_88 = arith.constant 3 : index
      %c0_89 = arith.constant 0 : index
      %c0_90 = arith.constant 0 : index
      %147 = vector.load %arg9[%c3_88, %c0_89, %c0_90] : memref<4x8x8xf32, #tpu.memory_space<vmem>>, vector<1x8x8xf32>
      %148 = vector.shape_cast %147 : vector<1x8x8xf32> to vector<8x8xf32>
      %149 = vector.broadcast %134 : vector<8x1xf32> to vector<8x8xf32>
      %150 = arith.mulf %149, %148 : vector<8x8xf32>
      %151 = vector.extract_strided_slice %19 {offsets = [0, 24], sizes = [8, 8], strides = [1, 1]} : vector<8x32xf32> to vector<8x8xf32>
      %cst_91 = arith.constant dense<0.000000e+00> : vector<8x8xf32>
      %152 = tpu.matmul %137, %151, %cst_91 {dimension_numbers = #tpu.dot_dimension_numbers<[1], [0], [0], [1], [0, 0, 1, 1], [], []>} : vector<8x8xf32>, vector<8x8xf32>, vector<8x8xf32> -> vector<8x8xf32>
      %153 = arith.addf %150, %152 : vector<8x8xf32>
      %c3_92 = arith.constant 3 : index
      %c0_93 = arith.constant 0 : index
      %c0_94 = arith.constant 0 : index
      %154 = vector.load %arg9[%c3_92, %c0_93, %c0_94] : memref<4x8x8xf32, #tpu.memory_space<vmem>>, vector<1x8x8xf32>
      %155 = vector.shape_cast %154 : vector<1x8x8xf32> to vector<8x8xf32>
      %156 = vector.shape_cast %153 : vector<8x8xf32> to vector<1x8x8xf32>
      tpu.vector_store %arg9[%c3_92, %c0_93, %c0_94], %156 {strides = array<i32>} : memref<4x8x8xf32, #tpu.memory_space<vmem>>, vector<1x8x8xf32>,
      %c3_95 = arith.constant 3 : index
      %c0_96 = arith.constant 0 : index
      %c0_97 = arith.constant 0 : index
      %157 = vector.load %arg7[%c3_95, %c0_96, %c0_97] : memref<4x8x1xf32, #tpu.memory_space<vmem>>, vector<1x8x1xf32>
      %158 = vector.shape_cast %157 : vector<1x8x1xf32> to vector<8x1xf32>
      %159 = vector.shape_cast %132 : vector<8x1xf32> to vector<1x8x1xf32>
      tpu.vector_store %arg7[%c3_95, %c0_96, %c0_97], %159 {strides = array<i32>} : memref<4x8x1xf32, #tpu.memory_space<vmem>>, vector<1x8x1xf32>,
    } else {
    }
    %6 = arith.cmpi eq, %arg2, %arg1 : i32
    %7 = arith.extui %6 : i1 to i32
    %c0_i32_2 = arith.constant 0 : i32
    %8 = arith.cmpi ne, %7, %c0_i32_2 : i32
    scf.if %8 {
      %c0 = arith.constant 0 : index
      %c0_5 = arith.constant 0 : index
      %c0_6 = arith.constant 0 : index
      %12 = vector.load %arg3[%c0, %c0_5, %c0_6] : memref<1x8x32xf32, #tpu.memory_space<vmem>>, vector<1x8x32xf32>
      %13 = vector.shape_cast %12 : vector<1x8x32xf32> to vector<8x32xf32>
      %cst = arith.constant 0.353553385 : f32
      %14 = vector.broadcast %cst : f32 to vector<8x32xf32>
      %15 = arith.mulf %13, %14 : vector<8x32xf32>
      %c0_7 = arith.constant 0 : index
      %c0_8 = arith.constant 0 : index
      %c0_9 = arith.constant 0 : index
      %16 = vector.load %arg4[%c0_7, %c0_8, %c0_9] : memref<1x8x32xf32, #tpu.memory_space<vmem>>, vector<1x8x32xf32>
      %17 = vector.shape_cast %16 : vector<1x8x32xf32> to vector<8x32xf32>
      %c0_10 = arith.constant 0 : index
      %c0_11 = arith.constant 0 : index
      %c0_12 = arith.constant 0 : index
      %18 = vector.load %arg5[%c0_10, %c0_11, %c0_12] : memref<1x8x32xf32, #tpu.memory_space<vmem>>, vector<1x8x32xf32>
      %19 = vector.shape_cast %18 : vector<1x8x32xf32> to vector<8x32xf32>
      %20 = tpu.iota {dimensions = array<i32: 0>} : vector<8x8xi32>
      %21 = tpu.iota {dimensions = array<i32: 1>} : vector<8x8xi32>
      %22 = arith.cmpi sle, %21, %20 : vector<8x8xi32>
      %23 = vector.extract_strided_slice %15 {offsets = [0, 0], sizes = [8, 8], strides = [1, 1]} : vector<8x32xf32> to vector<8x8xf32>
      %24 = vector.extract_strided_slice %17 {offsets = [0, 0], sizes = [8, 8], strides = [1, 1]} : vector<8x32xf32> to vector<8x8xf32>
      %cst_13 = arith.constant dense<0.000000e+00> : vector<8x8xf32>
      %25 = tpu.matmul %23, %24, %cst_13 {dimension_numbers = #tpu.dot_dimension_numbers<[1], [1], [0], [0], [0, 0, 1, 0], [], []>} : vector<8x8xf32>, vector<8x8xf32>, vector<8x8xf32> -> vector<8x8xf32>
      %cst_14 = arith.constant -1.000000e+30 : f32
      %26 = vector.broadcast %cst_14 : f32 to vector<8x8xf32>
      %27 = arith.select %22, %25, %26 : vector<8x8xi1>, vector<8x8xf32>
      %c0_15 = arith.constant 0 : index
      %c0_16 = arith.constant 0 : index
      %c0_17 = arith.constant 0 : index
      %28 = vector.load %arg7[%c0_15, %c0_16, %c0_17] : memref<4x8x1xf32, #tpu.memory_space<vmem>>, vector<1x8x1xf32>
      %29 = vector.shape_cast %28 : vector<1x8x1xf32> to vector<8x1xf32>
      %cst_18 = arith.constant dense<0xFF800000> : vector<8xf32>
      %30 = vector.multi_reduction <maximumf>, %27, %cst_18 [1] : vector<8x8xf32> to vector<8xf32>
      %31 = vector.shape_cast %30 : vector<8xf32> to vector<8x1xf32>
      %32 = arith.maximumf %29, %31 : vector<8x1xf32>
      %33 = arith.subf %29, %32 : vector<8x1xf32>
      %34 = math.exp %33 : vector<8x1xf32>
      %35 = vector.broadcast %32 : vector<8x1xf32> to vector<8x8xf32>
      %36 = arith.subf %27, %35 : vector<8x8xf32>
      %37 = math.exp %36 : vector<8x8xf32>
      %c0_19 = arith.constant 0 : index
      %c0_20 = arith.constant 0 : index
      %c0_21 = arith.constant 0 : index
      %38 = vector.load %arg8[%c0_19, %c0_20, %c0_21] : memref<4x8x1xf32, #tpu.memory_space<vmem>>, vector<1x8x1xf32>
      %39 = vector.shape_cast %38 : vector<1x8x1xf32> to vector<8x1xf32>
      %40 = arith.mulf %34, %39 : vector<8x1xf32>
      %cst_22 = arith.constant dense<0.000000e+00> : vector<8xf32>
      %41 = vector.multi_reduction <add>, %37, %cst_22 [1] : vector<8x8xf32> to vector<8xf32>
      %42 = vector.shape_cast %41 : vector<8xf32> to vector<8x1xf32>
      %43 = arith.addf %40, %42 : vector<8x1xf32>
      %c0_23 = arith.constant 0 : index
      %c0_24 = arith.constant 0 : index
      %c0_25 = arith.constant 0 : index
      %44 = vector.load %arg8[%c0_23, %c0_24, %c0_25] : memref<4x8x1xf32, #tpu.memory_space<vmem>>, vector<1x8x1xf32>
      %45 = vector.shape_cast %44 : vector<1x8x1xf32> to vector<8x1xf32>
      %46 = vector.shape_cast %43 : vector<8x1xf32> to vector<1x8x1xf32>
      tpu.vector_store %arg8[%c0_23, %c0_24, %c0_25], %46 {strides = array<i32>} : memref<4x8x1xf32, #tpu.memory_space<vmem>>, vector<1x8x1xf32>,
      %c0_26 = arith.constant 0 : index
      %c0_27 = arith.constant 0 : index
      %c0_28 = arith.constant 0 : index
      %47 = vector.load %arg9[%c0_26, %c0_27, %c0_28] : memref<4x8x8xf32, #tpu.memory_space<vmem>>, vector<1x8x8xf32>
      %48 = vector.shape_cast %47 : vector<1x8x8xf32> to vector<8x8xf32>
      %49 = vector.broadcast %34 : vector<8x1xf32> to vector<8x8xf32>
      %50 = arith.mulf %49, %48 : vector<8x8xf32>
      %51 = vector.extract_strided_slice %19 {offsets = [0, 0], sizes = [8, 8], strides = [1, 1]} : vector<8x32xf32> to vector<8x8xf32>
      %cst_29 = arith.constant dense<0.000000e+00> : vector<8x8xf32>
      %52 = tpu.matmul %37, %51, %cst_29 {dimension_numbers = #tpu.dot_dimension_numbers<[1], [0], [0], [1], [0, 0, 1, 1], [], []>} : vector<8x8xf32>, vector<8x8xf32>, vector<8x8xf32> -> vector<8x8xf32>
      %53 = arith.addf %50, %52 : vector<8x8xf32>
      %c0_30 = arith.constant 0 : index
      %c0_31 = arith.constant 0 : index
      %c0_32 = arith.constant 0 : index
      %54 = vector.load %arg9[%c0_30, %c0_31, %c0_32] : memref<4x8x8xf32, #tpu.memory_space<vmem>>, vector<1x8x8xf32>
      %55 = vector.shape_cast %54 : vector<1x8x8xf32> to vector<8x8xf32>
      %56 = vector.shape_cast %53 : vector<8x8xf32> to vector<1x8x8xf32>
      tpu.vector_store %arg9[%c0_30, %c0_31, %c0_32], %56 {strides = array<i32>} : memref<4x8x8xf32, #tpu.memory_space<vmem>>, vector<1x8x8xf32>,
      %c0_33 = arith.constant 0 : index
      %c0_34 = arith.constant 0 : index
      %c0_35 = arith.constant 0 : index
      %57 = vector.load %arg7[%c0_33, %c0_34, %c0_35] : memref<4x8x1xf32, #tpu.memory_space<vmem>>, vector<1x8x1xf32>
      %58 = vector.shape_cast %57 : vector<1x8x1xf32> to vector<8x1xf32>
      %59 = vector.shape_cast %32 : vector<8x1xf32> to vector<1x8x1xf32>
      tpu.vector_store %arg7[%c0_33, %c0_34, %c0_35], %59 {strides = array<i32>} : memref<4x8x1xf32, #tpu.memory_space<vmem>>, vector<1x8x1xf32>,
      %60 = vector.extract_strided_slice %15 {offsets = [0, 8], sizes = [8, 8], strides = [1, 1]} : vector<8x32xf32> to vector<8x8xf32>
      %61 = vector.extract_strided_slice %17 {offsets = [0, 8], sizes = [8, 8], strides = [1, 1]} : vector<8x32xf32> to vector<8x8xf32>
      %cst_36 = arith.constant dense<0.000000e+00> : vector<8x8xf32>
      %62 = tpu.matmul %60, %61, %cst_36 {dimension_numbers = #tpu.dot_dimension_numbers<[1], [1], [0], [0], [0, 0, 1, 0], [], []>} : vector<8x8xf32>, vector<8x8xf32>, vector<8x8xf32> -> vector<8x8xf32>
      %cst_37 = arith.constant -1.000000e+30 : f32
      %63 = vector.broadcast %cst_37 : f32 to vector<8x8xf32>
      %64 = arith.select %22, %62, %63 : vector<8x8xi1>, vector<8x8xf32>
      %c1 = arith.constant 1 : index
      %c0_38 = arith.constant 0 : index
      %c0_39 = arith.constant 0 : index
      %65 = vector.load %arg7[%c1, %c0_38, %c0_39] : memref<4x8x1xf32, #tpu.memory_space<vmem>>, vector<1x8x1xf32>
      %66 = vector.shape_cast %65 : vector<1x8x1xf32> to vector<8x1xf32>
      %cst_40 = arith.constant dense<0xFF800000> : vector<8xf32>
      %67 = vector.multi_reduction <maximumf>, %64, %cst_40 [1] : vector<8x8xf32> to vector<8xf32>
      %68 = vector.shape_cast %67 : vector<8xf32> to vector<8x1xf32>
      %69 = arith.maximumf %66, %68 : vector<8x1xf32>
      %70 = arith.subf %66, %69 : vector<8x1xf32>
      %71 = math.exp %70 : vector<8x1xf32>
      %72 = vector.broadcast %69 : vector<8x1xf32> to vector<8x8xf32>
      %73 = arith.subf %64, %72 : vector<8x8xf32>
      %74 = math.exp %73 : vector<8x8xf32>
      %c1_41 = arith.constant 1 : index
      %c0_42 = arith.constant 0 : index
      %c0_43 = arith.constant 0 : index
      %75 = vector.load %arg8[%c1_41, %c0_42, %c0_43] : memref<4x8x1xf32, #tpu.memory_space<vmem>>, vector<1x8x1xf32>
      %76 = vector.shape_cast %75 : vector<1x8x1xf32> to vector<8x1xf32>
      %77 = arith.mulf %71, %76 : vector<8x1xf32>
      %cst_44 = arith.constant dense<0.000000e+00> : vector<8xf32>
      %78 = vector.multi_reduction <add>, %74, %cst_44 [1] : vector<8x8xf32> to vector<8xf32>
      %79 = vector.shape_cast %78 : vector<8xf32> to vector<8x1xf32>
      %80 = arith.addf %77, %79 : vector<8x1xf32>
      %c1_45 = arith.constant 1 : index
      %c0_46 = arith.constant 0 : index
      %c0_47 = arith.constant 0 : index
      %81 = vector.load %arg8[%c1_45, %c0_46, %c0_47] : memref<4x8x1xf32, #tpu.memory_space<vmem>>, vector<1x8x1xf32>
      %82 = vector.shape_cast %81 : vector<1x8x1xf32> to vector<8x1xf32>
      %83 = vector.shape_cast %80 : vector<8x1xf32> to vector<1x8x1xf32>
      tpu.vector_store %arg8[%c1_45, %c0_46, %c0_47], %83 {strides = array<i32>} : memref<4x8x1xf32, #tpu.memory_space<vmem>>, vector<1x8x1xf32>,
      %c1_48 = arith.constant 1 : index
      %c0_49 = arith.constant 0 : index
      %c0_50 = arith.constant 0 : index
      %84 = vector.load %arg9[%c1_48, %c0_49, %c0_50] : memref<4x8x8xf32, #tpu.memory_space<vmem>>, vector<1x8x8xf32>
      %85 = vector.shape_cast %84 : vector<1x8x8xf32> to vector<8x8xf32>
      %86 = vector.broadcast %71 : vector<8x1xf32> to vector<8x8xf32>
      %87 = arith.mulf %86, %85 : vector<8x8xf32>
      %88 = vector.extract_strided_slice %19 {offsets = [0, 8], sizes = [8, 8], strides = [1, 1]} : vector<8x32xf32> to vector<8x8xf32>
      %cst_51 = arith.constant dense<0.000000e+00> : vector<8x8xf32>
      %89 = tpu.matmul %74, %88, %cst_51 {dimension_numbers = #tpu.dot_dimension_numbers<[1], [0], [0], [1], [0, 0, 1, 1], [], []>} : vector<8x8xf32>, vector<8x8xf32>, vector<8x8xf32> -> vector<8x8xf32>
      %90 = arith.addf %87, %89 : vector<8x8xf32>
      %c1_52 = arith.constant 1 : index
      %c0_53 = arith.constant 0 : index
      %c0_54 = arith.constant 0 : index
      %91 = vector.load %arg9[%c1_52, %c0_53, %c0_54] : memref<4x8x8xf32, #tpu.memory_space<vmem>>, vector<1x8x8xf32>
      %92 = vector.shape_cast %91 : vector<1x8x8xf32> to vector<8x8xf32>
      %93 = vector.shape_cast %90 : vector<8x8xf32> to vector<1x8x8xf32>
      tpu.vector_store %arg9[%c1_52, %c0_53, %c0_54], %93 {strides = array<i32>} : memref<4x8x8xf32, #tpu.memory_space<vmem>>, vector<1x8x8xf32>,
      %c1_55 = arith.constant 1 : index
      %c0_56 = arith.constant 0 : index
      %c0_57 = arith.constant 0 : index
      %94 = vector.load %arg7[%c1_55, %c0_56, %c0_57] : memref<4x8x1xf32, #tpu.memory_space<vmem>>, vector<1x8x1xf32>
      %95 = vector.shape_cast %94 : vector<1x8x1xf32> to vector<8x1xf32>
      %96 = vector.shape_cast %69 : vector<8x1xf32> to vector<1x8x1xf32>
      tpu.vector_store %arg7[%c1_55, %c0_56, %c0_57], %96 {strides = array<i32>} : memref<4x8x1xf32, #tpu.memory_space<vmem>>, vector<1x8x1xf32>,
      %97 = vector.extract_strided_slice %15 {offsets = [0, 16], sizes = [8, 8], strides = [1, 1]} : vector<8x32xf32> to vector<8x8xf32>
      %98 = vector.extract_strided_slice %17 {offsets = [0, 16], sizes = [8, 8], strides = [1, 1]} : vector<8x32xf32> to vector<8x8xf32>
      %cst_58 = arith.constant dense<0.000000e+00> : vector<8x8xf32>
      %99 = tpu.matmul %97, %98, %cst_58 {dimension_numbers = #tpu.dot_dimension_numbers<[1], [1], [0], [0], [0, 0, 1, 0], [], []>} : vector<8x8xf32>, vector<8x8xf32>, vector<8x8xf32> -> vector<8x8xf32>
      %cst_59 = arith.constant -1.000000e+30 : f32
      %100 = vector.broadcast %cst_59 : f32 to vector<8x8xf32>
      %101 = arith.select %22, %99, %100 : vector<8x8xi1>, vector<8x8xf32>
      %c2 = arith.constant 2 : index
      %c0_60 = arith.constant 0 : index
      %c0_61 = arith.constant 0 : index
      %102 = vector.load %arg7[%c2, %c0_60, %c0_61] : memref<4x8x1xf32, #tpu.memory_space<vmem>>, vector<1x8x1xf32>
      %103 = vector.shape_cast %102 : vector<1x8x1xf32> to vector<8x1xf32>
      %cst_62 = arith.constant dense<0xFF800000> : vector<8xf32>
      %104 = vector.multi_reduction <maximumf>, %101, %cst_62 [1] : vector<8x8xf32> to vector<8xf32>
      %105 = vector.shape_cast %104 : vector<8xf32> to vector<8x1xf32>
      %106 = arith.maximumf %103, %105 : vector<8x1xf32>
      %107 = arith.subf %103, %106 : vector<8x1xf32>
      %108 = math.exp %107 : vector<8x1xf32>
      %109 = vector.broadcast %106 : vector<8x1xf32> to vector<8x8xf32>
      %110 = arith.subf %101, %109 : vector<8x8xf32>
      %111 = math.exp %110 : vector<8x8xf32>
      %c2_63 = arith.constant 2 : index
      %c0_64 = arith.constant 0 : index
      %c0_65 = arith.constant 0 : index
      %112 = vector.load %arg8[%c2_63, %c0_64, %c0_65] : memref<4x8x1xf32, #tpu.memory_space<vmem>>, vector<1x8x1xf32>
      %113 = vector.shape_cast %112 : vector<1x8x1xf32> to vector<8x1xf32>
      %114 = arith.mulf %108, %113 : vector<8x1xf32>
      %cst_66 = arith.constant dense<0.000000e+00> : vector<8xf32>
      %115 = vector.multi_reduction <add>, %111, %cst_66 [1] : vector<8x8xf32> to vector<8xf32>
      %116 = vector.shape_cast %115 : vector<8xf32> to vector<8x1xf32>
      %117 = arith.addf %114, %116 : vector<8x1xf32>
      %c2_67 = arith.constant 2 : index
      %c0_68 = arith.constant 0 : index
      %c0_69 = arith.constant 0 : index
      %118 = vector.load %arg8[%c2_67, %c0_68, %c0_69] : memref<4x8x1xf32, #tpu.memory_space<vmem>>, vector<1x8x1xf32>
      %119 = vector.shape_cast %118 : vector<1x8x1xf32> to vector<8x1xf32>
      %120 = vector.shape_cast %117 : vector<8x1xf32> to vector<1x8x1xf32>
      tpu.vector_store %arg8[%c2_67, %c0_68, %c0_69], %120 {strides = array<i32>} : memref<4x8x1xf32, #tpu.memory_space<vmem>>, vector<1x8x1xf32>,
      %c2_70 = arith.constant 2 : index
      %c0_71 = arith.constant 0 : index
      %c0_72 = arith.constant 0 : index
      %121 = vector.load %arg9[%c2_70, %c0_71, %c0_72] : memref<4x8x8xf32, #tpu.memory_space<vmem>>, vector<1x8x8xf32>
      %122 = vector.shape_cast %121 : vector<1x8x8xf32> to vector<8x8xf32>
      %123 = vector.broadcast %108 : vector<8x1xf32> to vector<8x8xf32>
      %124 = arith.mulf %123, %122 : vector<8x8xf32>
      %125 = vector.extract_strided_slice %19 {offsets = [0, 16], sizes = [8, 8], strides = [1, 1]} : vector<8x32xf32> to vector<8x8xf32>
      %cst_73 = arith.constant dense<0.000000e+00> : vector<8x8xf32>
      %126 = tpu.matmul %111, %125, %cst_73 {dimension_numbers = #tpu.dot_dimension_numbers<[1], [0], [0], [1], [0, 0, 1, 1], [], []>} : vector<8x8xf32>, vector<8x8xf32>, vector<8x8xf32> -> vector<8x8xf32>
      %127 = arith.addf %124, %126 : vector<8x8xf32>
      %c2_74 = arith.constant 2 : index
      %c0_75 = arith.constant 0 : index
      %c0_76 = arith.constant 0 : index
      %128 = vector.load %arg9[%c2_74, %c0_75, %c0_76] : memref<4x8x8xf32, #tpu.memory_space<vmem>>, vector<1x8x8xf32>
      %129 = vector.shape_cast %128 : vector<1x8x8xf32> to vector<8x8xf32>
      %130 = vector.shape_cast %127 : vector<8x8xf32> to vector<1x8x8xf32>
      tpu.vector_store %arg9[%c2_74, %c0_75, %c0_76], %130 {strides = array<i32>} : memref<4x8x8xf32, #tpu.memory_space<vmem>>, vector<1x8x8xf32>,
      %c2_77 = arith.constant 2 : index
      %c0_78 = arith.constant 0 : index
      %c0_79 = arith.constant 0 : index
      %131 = vector.load %arg7[%c2_77, %c0_78, %c0_79] : memref<4x8x1xf32, #tpu.memory_space<vmem>>, vector<1x8x1xf32>
      %132 = vector.shape_cast %131 : vector<1x8x1xf32> to vector<8x1xf32>
      %133 = vector.shape_cast %106 : vector<8x1xf32> to vector<1x8x1xf32>
      tpu.vector_store %arg7[%c2_77, %c0_78, %c0_79], %133 {strides = array<i32>} : memref<4x8x1xf32, #tpu.memory_space<vmem>>, vector<1x8x1xf32>,
      %134 = vector.extract_strided_slice %15 {offsets = [0, 24], sizes = [8, 8], strides = [1, 1]} : vector<8x32xf32> to vector<8x8xf32>
      %135 = vector.extract_strided_slice %17 {offsets = [0, 24], sizes = [8, 8], strides = [1, 1]} : vector<8x32xf32> to vector<8x8xf32>
      %cst_80 = arith.constant dense<0.000000e+00> : vector<8x8xf32>
      %136 = tpu.matmul %134, %135, %cst_80 {dimension_numbers = #tpu.dot_dimension_numbers<[1], [1], [0], [0], [0, 0, 1, 0], [], []>} : vector<8x8xf32>, vector<8x8xf32>, vector<8x8xf32> -> vector<8x8xf32>
      %cst_81 = arith.constant -1.000000e+30 : f32
      %137 = vector.broadcast %cst_81 : f32 to vector<8x8xf32>
      %138 = arith.select %22, %136, %137 : vector<8x8xi1>, vector<8x8xf32>
      %c3 = arith.constant 3 : index
      %c0_82 = arith.constant 0 : index
      %c0_83 = arith.constant 0 : index
      %139 = vector.load %arg7[%c3, %c0_82, %c0_83] : memref<4x8x1xf32, #tpu.memory_space<vmem>>, vector<1x8x1xf32>
      %140 = vector.shape_cast %139 : vector<1x8x1xf32> to vector<8x1xf32>
      %cst_84 = arith.constant dense<0xFF800000> : vector<8xf32>
      %141 = vector.multi_reduction <maximumf>, %138, %cst_84 [1] : vector<8x8xf32> to vector<8xf32>
      %142 = vector.shape_cast %141 : vector<8xf32> to vector<8x1xf32>
      %143 = arith.maximumf %140, %142 : vector<8x1xf32>
      %144 = arith.subf %140, %143 : vector<8x1xf32>
      %145 = math.exp %144 : vector<8x1xf32>
      %146 = vector.broadcast %143 : vector<8x1xf32> to vector<8x8xf32>
      %147 = arith.subf %138, %146 : vector<8x8xf32>
      %148 = math.exp %147 : vector<8x8xf32>
      %c3_85 = arith.constant 3 : index
      %c0_86 = arith.constant 0 : index
      %c0_87 = arith.constant 0 : index
      %149 = vector.load %arg8[%c3_85, %c0_86, %c0_87] : memref<4x8x1xf32, #tpu.memory_space<vmem>>, vector<1x8x1xf32>
      %150 = vector.shape_cast %149 : vector<1x8x1xf32> to vector<8x1xf32>
      %151 = arith.mulf %145, %150 : vector<8x1xf32>
      %cst_88 = arith.constant dense<0.000000e+00> : vector<8xf32>
      %152 = vector.multi_reduction <add>, %148, %cst_88 [1] : vector<8x8xf32> to vector<8xf32>
      %153 = vector.shape_cast %152 : vector<8xf32> to vector<8x1xf32>
      %154 = arith.addf %151, %153 : vector<8x1xf32>
      %c3_89 = arith.constant 3 : index
      %c0_90 = arith.constant 0 : index
      %c0_91 = arith.constant 0 : index
      %155 = vector.load %arg8[%c3_89, %c0_90, %c0_91] : memref<4x8x1xf32, #tpu.memory_space<vmem>>, vector<1x8x1xf32>
      %156 = vector.shape_cast %155 : vector<1x8x1xf32> to vector<8x1xf32>
      %157 = vector.shape_cast %154 : vector<8x1xf32> to vector<1x8x1xf32>
      tpu.vector_store %arg8[%c3_89, %c0_90, %c0_91], %157 {strides = array<i32>} : memref<4x8x1xf32, #tpu.memory_space<vmem>>, vector<1x8x1xf32>,
      %c3_92 = arith.constant 3 : index
      %c0_93 = arith.constant 0 : index
      %c0_94 = arith.constant 0 : index
      %158 = vector.load %arg9[%c3_92, %c0_93, %c0_94] : memref<4x8x8xf32, #tpu.memory_space<vmem>>, vector<1x8x8xf32>
      %159 = vector.shape_cast %158 : vector<1x8x8xf32> to vector<8x8xf32>
      %160 = vector.broadcast %145 : vector<8x1xf32> to vector<8x8xf32>
      %161 = arith.mulf %160, %159 : vector<8x8xf32>
      %162 = vector.extract_strided_slice %19 {offsets = [0, 24], sizes = [8, 8], strides = [1, 1]} : vector<8x32xf32> to vector<8x8xf32>
      %cst_95 = arith.constant dense<0.000000e+00> : vector<8x8xf32>
      %163 = tpu.matmul %148, %162, %cst_95 {dimension_numbers = #tpu.dot_dimension_numbers<[1], [0], [0], [1], [0, 0, 1, 1], [], []>} : vector<8x8xf32>, vector<8x8xf32>, vector<8x8xf32> -> vector<8x8xf32>
      %164 = arith.addf %161, %163 : vector<8x8xf32>
      %c3_96 = arith.constant 3 : index
      %c0_97 = arith.constant 0 : index
      %c0_98 = arith.constant 0 : index
      %165 = vector.load %arg9[%c3_96, %c0_97, %c0_98] : memref<4x8x8xf32, #tpu.memory_space<vmem>>, vector<1x8x8xf32>
      %166 = vector.shape_cast %165 : vector<1x8x8xf32> to vector<8x8xf32>
      %167 = vector.shape_cast %164 : vector<8x8xf32> to vector<1x8x8xf32>
      tpu.vector_store %arg9[%c3_96, %c0_97, %c0_98], %167 {strides = array<i32>} : memref<4x8x8xf32, #tpu.memory_space<vmem>>, vector<1x8x8xf32>,
      %c3_99 = arith.constant 3 : index
      %c0_100 = arith.constant 0 : index
      %c0_101 = arith.constant 0 : index
      %168 = vector.load %arg7[%c3_99, %c0_100, %c0_101] : memref<4x8x1xf32, #tpu.memory_space<vmem>>, vector<1x8x1xf32>
      %169 = vector.shape_cast %168 : vector<1x8x1xf32> to vector<8x1xf32>
      %170 = vector.shape_cast %143 : vector<8x1xf32> to vector<1x8x1xf32>
      tpu.vector_store %arg7[%c3_99, %c0_100, %c0_101], %170 {strides = array<i32>} : memref<4x8x1xf32, #tpu.memory_space<vmem>>, vector<1x8x1xf32>,
    } else {
    }
    %c0_i32_3 = arith.constant 0 : i32
    %9 = arith.cmpi eq, %arg2, %c0_i32_3 : i32
    %10 = arith.extui %9 : i1 to i32
    %c0_i32_4 = arith.constant 0 : i32
    %11 = arith.cmpi ne, %10, %c0_i32_4 : i32
    scf.if %11 {
      %c0 = arith.constant 0 : index
      %c0_5 = arith.constant 0 : index
      %c0_6 = arith.constant 0 : index
      %12 = vector.load %arg9[%c0, %c0_5, %c0_6] : memref<4x8x8xf32, #tpu.memory_space<vmem>>, vector<1x8x8xf32>
      %13 = vector.shape_cast %12 : vector<1x8x8xf32> to vector<8x8xf32>
      %c0_7 = arith.constant 0 : index
      %c0_8 = arith.constant 0 : index
      %c0_9 = arith.constant 0 : index
      %14 = vector.load %arg8[%c0_7, %c0_8, %c0_9] : memref<4x8x1xf32, #tpu.memory_space<vmem>>, vector<1x8x1xf32>
      %15 = vector.shape_cast %14 : vector<1x8x1xf32> to vector<8x1xf32>
      %16 = vector.broadcast %15 : vector<8x1xf32> to vector<8x8xf32>
      %17 = arith.divf %13, %16 : vector<8x8xf32>
      %c1 = arith.constant 1 : index
      %c0_10 = arith.constant 0 : index
      %c0_11 = arith.constant 0 : index
      %18 = vector.load %arg9[%c1, %c0_10, %c0_11] : memref<4x8x8xf32, #tpu.memory_space<vmem>>, vector<1x8x8xf32>
      %19 = vector.shape_cast %18 : vector<1x8x8xf32> to vector<8x8xf32>
      %c1_12 = arith.constant 1 : index
      %c0_13 = arith.constant 0 : index
      %c0_14 = arith.constant 0 : index
      %20 = vector.load %arg8[%c1_12, %c0_13, %c0_14] : memref<4x8x1xf32, #tpu.memory_space<vmem>>, vector<1x8x1xf32>
      %21 = vector.shape_cast %20 : vector<1x8x1xf32> to vector<8x1xf32>
      %22 = vector.broadcast %21 : vector<8x1xf32> to vector<8x8xf32>
      %23 = arith.divf %19, %22 : vector<8x8xf32>
      %c2 = arith.constant 2 : index
      %c0_15 = arith.constant 0 : index
      %c0_16 = arith.constant 0 : index
      %24 = vector.load %arg9[%c2, %c0_15, %c0_16] : memref<4x8x8xf32, #tpu.memory_space<vmem>>, vector<1x8x8xf32>
      %25 = vector.shape_cast %24 : vector<1x8x8xf32> to vector<8x8xf32>
      %c2_17 = arith.constant 2 : index
      %c0_18 = arith.constant 0 : index
      %c0_19 = arith.constant 0 : index
      %26 = vector.load %arg8[%c2_17, %c0_18, %c0_19] : memref<4x8x1xf32, #tpu.memory_space<vmem>>, vector<1x8x1xf32>
      %27 = vector.shape_cast %26 : vector<1x8x1xf32> to vector<8x1xf32>
      %28 = vector.broadcast %27 : vector<8x1xf32> to vector<8x8xf32>
      %29 = arith.divf %25, %28 : vector<8x8xf32>
      %c3 = arith.constant 3 : index
      %c0_20 = arith.constant 0 : index
      %c0_21 = arith.constant 0 : index
      %30 = vector.load %arg9[%c3, %c0_20, %c0_21] : memref<4x8x8xf32, #tpu.memory_space<vmem>>, vector<1x8x8xf32>
      %31 = vector.shape_cast %30 : vector<1x8x8xf32> to vector<8x8xf32>
      %c3_22 = arith.constant 3 : index
      %c0_23 = arith.constant 0 : index
      %c0_24 = arith.constant 0 : index
      %32 = vector.load %arg8[%c3_22, %c0_23, %c0_24] : memref<4x8x1xf32, #tpu.memory_space<vmem>>, vector<1x8x1xf32>
      %33 = vector.shape_cast %32 : vector<1x8x1xf32> to vector<8x1xf32>
      %34 = vector.broadcast %33 : vector<8x1xf32> to vector<8x8xf32>
      %35 = arith.divf %31, %34 : vector<8x8xf32>
      %36 = tpu.concatenate %17, %23, %29, %35 in 1 : vector<8x8xf32>, vector<8x8xf32>, vector<8x8xf32>, vector<8x8xf32> -> vector<8x32xf32>
      %c0_25 = arith.constant 0 : index
      %c0_26 = arith.constant 0 : index
      %c0_27 = arith.constant 0 : index
      %37 = vector.load %arg6[%c0_25, %c0_26, %c0_27] : memref<1x8x32xf32, #tpu.memory_space<vmem>>, vector<1x8x32xf32>
      %38 = vector.shape_cast %37 : vector<1x8x32xf32> to vector<8x32xf32>
      %39 = vector.shape_cast %36 : vector<8x32xf32> to vector<1x8x32xf32>
      tpu.vector_store %arg6[%c0_25, %c0_26, %c0_27], %39 {strides = array<i32>} : memref<1x8x32xf32, #tpu.memory_space<vmem>>, vector<1x8x32xf32>,
    } else {
    }
    return
  }
  func.func @transform_0(%arg0: i32, %arg1: i32, %arg2: i32) -> (i32, i32, i32) {
    %c0_i32 = arith.constant 0 : i32
    %c0_i32_0 = arith.constant 0 : i32
    return %arg0, %arg1, %c0_i32 : i32, i32, i32
  }
  func.func @transform_1(%arg0: i32, %arg1: i32, %arg2: i32) -> (i32, i32, i32) {
    %c0_i32 = arith.constant 0 : i32
    %c0_i32_0 = arith.constant 0 : i32
    return %arg0, %arg2, %c0_i32 : i32, i32, i32
  }
  func.func @transform_2(%arg0: i32, %arg1: i32, %arg2: i32) -> (i32, i32, i32) {
    %c0_i32 = arith.constant 0 : i32
    %c0_i32_0 = arith.constant 0 : i32
    return %arg0, %arg2, %c0_i32 : i32, i32, i32
  }
  func.func @transform_3(%arg0: i32, %arg1: i32, %arg2: i32) -> (i32, i32, i32) {
    %c0_i32 = arith.constant 0 : i32
    %c0_i32_0 = arith.constant 0 : i32
    return %arg0, %arg1, %c0_i32 : i32, i32, i32
  }
}

</mosaic_0001>

<llo_original>
// kernel: multi_head_attention_forward.3
$region0: #{multi_head_attention_forward.3}
  #allocation0 [shape = 'u32[]', space=smem, size = 0x4, offset = 0x4, fixed_abs, tag = 'smem constant byte address 0x4 - core index']
  #allocation1 [shape = 'u32[72,128]{1,0:T(1,128)}', space=vmem, size = 0x9000, scoped, tag = 'internal scratch']
  #allocation2 [shape = 'f32[16,96]{1,0:T(8,128)}', space=vmem, size = 0x2000, scoped, tag = 'scratch operand']
  %s0 = inlined_call_operand.hbm [shape: f32[16,32], index: 0, kind: input, shape index: {}]
  %s1 = inlined_call_operand.hbm [shape: f32[32,96], index: 1, kind: input, shape index: {}]
  %s2 = inlined_call_operand.vmem [shape: f32[16,96], index: 2, kind: output, shape index: {}]
  %s3 = sld [smem:[#allocation0]]
  $region34: #{multi_head_attention_forward.3} parent=0
    _
  %s5 = ssub.s32 1, %s3
  %s6 = scalar_select 0, %s5, %s3
  $region1: #{multi_head_attention_forward.3} parent=0
    #allocation3 [shape = 'u8[8192]{0}', space=vmem, size = 0x2000, scoped, tag = 'input window, operand 0, single buffered']
    #allocation4 [shape = 's32[1]{0}', space=sflag, size = 0x4, scoped, tag = 'scoped memory for multi_head_attention_forward.3']
    #allocation5 [shape = 'u8[16384]{0}', space=vmem, size = 0x4000, scoped, tag = 'input window, operand 1, single buffered']
    #allocation6 [shape = 's32[1]{0}', space=sflag, size = 0x4, scoped, tag = 'scoped memory for multi_head_attention_forward.3']
    %7 = vsyncpa [#allocation4], 0
    %8 = vsyncpa [#allocation6], 0
    // Predicated region
    $region2: #{multi_head_attention_forward.3} parent=1 // pred_check
      _
    $region3: #{multi_head_attention_forward.3} parent=1 // pred_check_branch
      %10 = sbr.rel (0) target = $region5
    $region4: #{multi_head_attention_forward.3} parent=1 // pred_region
      %12 = vsyncadd [#allocation4], 0
      %s13 = sshll.u32 %s0, 4
      %s14 = int_to_ptr.hbm [resolvable:$true] %s13
      %s15 = sshll.u32 [#allocation3], 4
      %s16 = int_to_ptr.vmem [resolvable:$true] %s15
      %21 = dma.hbm_to_vmem [thread:$0]  %s14, 256, %s16, [#allocation4], 128, 128, 8
    $region5: #{multi_head_attention_forward.3} parent=1 // pred_fallthru
      _
    // Predicated region
    $region6: #{multi_head_attention_forward.3} parent=1 // pred_check
      _
    $region7: #{multi_head_attention_forward.3} parent=1 // pred_check_branch
      %23 = sbr.rel (0) target = $region9
    $region8: #{multi_head_attention_forward.3} parent=1 // pred_region
      %25 = vsyncadd [#allocation6], 0
      %s26 = sshll.u32 %s1, 4
      %s27 = int_to_ptr.hbm [resolvable:$true] %s26
      %s28 = sshll.u32 [#allocation5], 4
      %s29 = int_to_ptr.vmem [resolvable:$true] %s28
      %34 = dma.hbm_to_vmem [thread:$0]  %s27, 512, %s29, [#allocation6], 128, 128, 8
    $region9: #{multi_head_attention_forward.3} parent=1 // pred_fallthru
      _
    // Predicated region
    $region10: #{multi_head_attention_forward.3} parent=1 // pred_check
      _
    $region11: #{multi_head_attention_forward.3} parent=1 // pred_check_branch
      %36 = sbr.rel (0) target = $region13
    $region12: #{multi_head_attention_forward.3} parent=1 // pred_region
      %38 = dma.done [#allocation4], 256
    $region13: #{multi_head_attention_forward.3} parent=1 // pred_fallthru
      _
    // Predicated region
    $region14: #{multi_head_attention_forward.3} parent=1 // pred_check
      _
    $region15: #{multi_head_attention_forward.3} parent=1 // pred_check_branch
      %40 = sbr.rel (0) target = $region17
    $region16: #{multi_head_attention_forward.3} parent=1 // pred_region
      %42 = dma.done [#allocation6], 512
    $region17: #{multi_head_attention_forward.3} parent=1 // pred_fallthru
      _
    %p43 = scmp.eq.s32.totalorder 0, 0
    // Predicated region
    $region18: #{multi_head_attention_forward.3} parent=1 // pred_check
      %p44 = pneg %p43
    $region19: #{multi_head_attention_forward.3} parent=1 // pred_check_branch
      %46 = sbr.rel (%p44) target = $region21
    $region20: #{multi_head_attention_forward.3} parent=1 // pred_region
      %vm47 = vcmask 785408
      %48 = vst.msk [vmem:[#allocation2] sm:$0xff] %vm47, 0.0
      %49 = vst.msk [vmem:[#allocation2 + $0x8] sm:$0xff] %vm47, 0.0
    $region21: #{multi_head_attention_forward.3} parent=1 // pred_fallthru
      _
    %v50 = vld [vmem:[#allocation2] sm:$0xff]
    %v51 = vld [vmem:[#allocation2 + $0x8] sm:$0xff]
    %v52 = vld [vmem:[#allocation3] sm:$0xff]
    %v53 = vld [vmem:[#allocation3 + $0x8] sm:$0xff]
    %v54 = vld [vmem:[#allocation5] sm:$0xff]
    %v55 = vld [vmem:[#allocation5 + $0x8] sm:$0xff]
    %v56 = vld [vmem:[#allocation5 + $0x10] sm:$0xff]
    %v57 = vld [vmem:[#allocation5 + $0x18] sm:$0xff]
    %vm58 = vcmask 261120
    %v60 = vsel %vm58, %v52, 0
    %v63 = vsel %vm58, %v53, 0
    %65 = vmatpush.msra.mxu0 0.0
    %66 = vmatpush.msra.mxu0 0.0
    %67 = vmatpush.msra.mxu0 0.0
    %68 = vmatpush.msra.mxu0 0.0
    %69 = vmatpush.msra.mxu0 0.0
    %70 = vmatpush.msra.mxu0 0.0
    %71 = vmatpush.msra.mxu0 0.0
    %72 = vmatpush.msra.mxu0 0.0
    %73 = vmatpush.msra.mxu0 0.0
    %74 = vmatpush.msra.mxu0 0.0
    %75 = vmatpush.msra.mxu0 0.0
    %76 = vmatpush.msra.mxu0 0.0
    %77 = vmatpush.msra.mxu0 %v57
    %78 = vmatpush.msra.mxu0 %v56
    %79 = vmatpush.msra.mxu0 %v55
    %80 = vmatpush.msra.mxu0 %v54
    %81 = vmatmul.f32.gmra.mxu0 %v60
    %v82 = vpop.f32.mrf.mxu0
    %v83 = vadd.f32 0.0, %v82
    %84 = vmatmul.f32.gmra.mxu0 %v63
    %v85 = vpop.f32.mrf.mxu0
    %v86 = vadd.f32 0.0, %v85
    %87 = vdwg.mxu0
    %v88 = vadd.f32 %v50, %v83
    %v89 = vadd.f32 %v51, %v86
    %vm90 = vcmask 785408
    %91 = vst.msk [vmem:[#allocation2] sm:$0xff] %vm90, %v88
    %92 = vst.msk [vmem:[#allocation2 + $0x8] sm:$0xff] %vm90, %v89
    // Predicated region
    $region22: #{multi_head_attention_forward.3} parent=1 // pred_check
      %p93 = pneg %p43
    $region23: #{multi_head_attention_forward.3} parent=1 // pred_check_branch
      %95 = sbr.rel (%p93) target = $region25
    $region24: #{multi_head_attention_forward.3} parent=1 // pred_region
      %v96 = vld [vmem:[#allocation2] sm:$0xff]
      %v97 = vld [vmem:[#allocation2 + $0x8] sm:$0xff]
      %98 = vst.msk [vmem:[%s2] sm:$0xff] %vm90, %v96
      %99 = vst.msk [vmem:[%s2 + $0x8] sm:$0xff] %vm90, %v97
    $region25: #{multi_head_attention_forward.3} parent=1 // pred_fallthru
      _
    // Predicated region
    $region26: #{multi_head_attention_forward.3} parent=1 // pred_check
      _
    $region27: #{multi_head_attention_forward.3} parent=1 // pred_check_branch
      %101 = sbr.rel (0) target = $region29
    $region28: #{multi_head_attention_forward.3} parent=1 // pred_region
      _
    $region29: #{multi_head_attention_forward.3} parent=1 // pred_fallthru
      _
    // Predicated region
    $region30: #{multi_head_attention_forward.3} parent=1 // pred_check
      _
    $region31: #{multi_head_attention_forward.3} parent=1 // pred_check_branch
      %103 = sbr.rel (0) target = $region33
    $region32: #{multi_head_attention_forward.3} parent=1 // pred_region
      _
    $region33: #{multi_head_attention_forward.3} parent=1 // pred_fallthru
      _
    %104 = vsyncpa [#allocation4], 1
    %105 = vsyncpa [#allocation6], 1

// kernel: multi_head_attention_forward.5
$region0: #{multi_head_attention_forward.5}
  #allocation0 [shape = 'u32[]', space=smem, size = 0x4, offset = 0x4, fixed_abs, tag = 'smem constant byte address 0x4 - core index']
  #allocation1 [shape = 'u32[72,128]{1,0:T(1,128)}', space=vmem, size = 0x9000, scoped, tag = 'internal scratch']
  #allocation2 [shape = 'f32[16,32]{1,0:T(8,128)}', space=vmem, size = 0x2000, scoped, tag = 'scratch operand']
  %s0 = inlined_call_operand.vmem [shape: f32[16,32], index: 0, kind: input, shape index: {}]
  %s1 = inlined_call_operand.vmem [shape: f32[32,32], index: 1, kind: input, shape index: {}]
  %s2 = inlined_call_operand.vmem [shape: f32[1,32], index: 2, kind: input, shape index: {}]
  %s3 = inlined_call_operand.hbm [shape: f32[16,32], index: 3, kind: output, shape index: {}]
  %s4 = sld [smem:[#allocation0]]
  $region30: #{multi_head_attention_forward.5} parent=0
    _
  %s6 = ssub.s32 1, %s4
  %s7 = scalar_select 0, %s6, %s4
  $region1: #{multi_head_attention_forward.5} parent=0
    #allocation3 [shape = 'u8[8192]{0}', space=vmem, size = 0x2000, scoped, tag = 'output window, operand 0, single buffered']
    #allocation4 [shape = 's32[1]{0}', space=sflag, size = 0x4, scoped, tag = 'scoped memory for multi_head_attention_forward.5']
    %8 = vsyncpa [#allocation4], 0
    // Predicated region
    $region2: #{multi_head_attention_forward.5} parent=1 // pred_check
      _
    $region3: #{multi_head_attention_forward.5} parent=1 // pred_check_branch
      %10 = sbr.rel (0) target = $region5
    $region4: #{multi_head_attention_forward.5} parent=1 // pred_region
      _
    $region5: #{multi_head_attention_forward.5} parent=1 // pred_fallthru
      _
    // Predicated region
    $region6: #{multi_head_attention_forward.5} parent=1 // pred_check
      _
    $region7: #{multi_head_attention_forward.5} parent=1 // pred_check_branch
      %12 = sbr.rel (0) target = $region9
    $region8: #{multi_head_attention_forward.5} parent=1 // pred_region
      _
    $region9: #{multi_head_attention_forward.5} parent=1 // pred_fallthru
      _
    // Predicated region
    $region10: #{multi_head_attention_forward.5} parent=1 // pred_check
      _
    $region11: #{multi_head_attention_forward.5} parent=1 // pred_check_branch
      %14 = sbr.rel (0) target = $region13
    $region12: #{multi_head_attention_forward.5} parent=1 // pred_region
      _
    $region13: #{multi_head_attention_forward.5} parent=1 // pred_fallthru
      _
    %p15 = scmp.eq.s32.totalorder 0, 0
    // Predicated region
    $region14: #{multi_head_attention_forward.5} parent=1 // pred_check
      %p16 = pneg %p15
    $region15: #{multi_head_attention_forward.5} parent=1 // pred_check_branch
      %18 = sbr.rel (%p16) target = $region17
    $region16: #{multi_head_attention_forward.5} parent=1 // pred_region
      %vm19 = vcmask 261120
      %20 = vst.msk [vmem:[#allocation2] sm:$0xff] %vm19, 0.0
      %21 = vst.msk [vmem:[#allocation2 + $0x8] sm:$0xff] %vm19, 0.0
    $region17: #{multi_head_attention_forward.5} parent=1 // pred_fallthru
      _
    %v22 = vld [vmem:[#allocation2] sm:$0xff]
    %v23 = vld [vmem:[#allocation2 + $0x8] sm:$0xff]
    %v24 = vld [vmem:[%s0] sm:$0xff]
    %v25 = vld [vmem:[%s0 + $0x8] sm:$0xff]
    %v26 = vld [vmem:[%s1] sm:$0xff]
    %v27 = vld [vmem:[%s1 + $0x8] sm:$0xff]
    %v28 = vld [vmem:[%s1 + $0x10] sm:$0xff]
    %v29 = vld [vmem:[%s1 + $0x18] sm:$0xff]
    %vm30 = vcmask 261120
    %v32 = vsel %vm30, %v24, 0
    %v35 = vsel %vm30, %v25, 0
    %37 = vmatpush.msra.mxu0 0.0
    %38 = vmatpush.msra.mxu0 0.0
    %39 = vmatpush.msra.mxu0 0.0
    %40 = vmatpush.msra.mxu0 0.0
    %41 = vmatpush.msra.mxu0 0.0
    %42 = vmatpush.msra.mxu0 0.0
    %43 = vmatpush.msra.mxu0 0.0
    %44 = vmatpush.msra.mxu0 0.0
    %45 = vmatpush.msra.mxu0 0.0
    %46 = vmatpush.msra.mxu0 0.0
    %47 = vmatpush.msra.mxu0 0.0
    %48 = vmatpush.msra.mxu0 0.0
    %49 = vmatpush.msra.mxu0 %v29
    %50 = vmatpush.msra.mxu0 %v28
    %51 = vmatpush.msra.mxu0 %v27
    %52 = vmatpush.msra.mxu0 %v26
    %53 = vmatmul.f32.gmra.mxu0 %v32
    %v54 = vpop.f32.mrf.mxu0
    %v55 = vadd.f32 0.0, %v54
    %56 = vmatmul.f32.gmra.mxu0 %v35
    %v57 = vpop.f32.mrf.mxu0
    %v58 = vadd.f32 0.0, %v57
    %59 = vdwg.mxu0
    %v60 = vadd.f32 %v22, %v55
    %v61 = vadd.f32 %v23, %v58
    %62 = vst.msk [vmem:[#allocation2] sm:$0xff] %vm30, %v60
    %63 = vst.msk [vmem:[#allocation2 + $0x8] sm:$0xff] %vm30, %v61
    // Predicated region
    $region18: #{multi_head_attention_forward.5} parent=1 // pred_check
      %p64 = pneg %p15
    $region19: #{multi_head_attention_forward.5} parent=1 // pred_check_branch
      %66 = sbr.rel (%p64) target = $region21
    $region20: #{multi_head_attention_forward.5} parent=1 // pred_region
      %v67 = vld [vmem:[#allocation2] sm:$0xff]
      %v68 = vld [vmem:[#allocation2 + $0x8] sm:$0xff]
      %v69 = vld [vmem:[%s2] sm:$0x1]
      %v71 = vperm.slane %v69, 0
      %v73 = vadd.f32 %v67, %v71
      %v74 = vadd.f32 %v68, %v71
      %75 = vst.msk [vmem:[#allocation3] sm:$0xff] %vm30, %v73
      %76 = vst.msk [vmem:[#allocation3 + $0x8] sm:$0xff] %vm30, %v74
    $region21: #{multi_head_attention_forward.5} parent=1 // pred_fallthru
      _
    // Predicated region
    $region22: #{multi_head_attention_forward.5} parent=1 // pred_check
      _
    $region23: #{multi_head_attention_forward.5} parent=1 // pred_check_branch
      %78 = sbr.rel (0) target = $region25
    $region24: #{multi_head_attention_forward.5} parent=1 // pred_region
      %80 = vsyncadd [#allocation4], 0
      %s81 = sshll.u32 [#allocation3], 4
      %s82 = int_to_ptr.vmem [resolvable:$true] %s81
      %s83 = sshll.u32 %s3, 4
      %s84 = int_to_ptr.hbm [resolvable:$true] %s83
      %89 = dma.vmem_to_hbm [thread:$0]  %s82, 256, %s84, [#allocation4], 128, 128, 8
    $region25: #{multi_head_attention_forward.5} parent=1 // pred_fallthru
      _
    // Predicated region
    $region26: #{multi_head_attention_forward.5} parent=1 // pred_check
      _
    $region27: #{multi_head_attention_forward.5} parent=1 // pred_check_branch
      %91 = sbr.rel (0) target = $region29
    $region28: #{multi_head_attention_forward.5} parent=1 // pred_region
      %93 = dma.done [#allocation4], 256
    $region29: #{multi_head_attention_forward.5} parent=1 // pred_fallthru
      _
    %94 = vsyncpa [#allocation4], 1

// kernel: multi_head_attention_forward.4
$region0: #{multi_head_attention_forward.4}
  #allocation0 [shape = 'u32[]', space=smem, size = 0x4, offset = 0x4, fixed_abs, tag = 'smem constant byte address 0x4 - core index']
  #allocation1 [shape = 'u32[72,128]{1,0:T(1,128)}', space=vmem, size = 0x9000, scoped, tag = 'internal scratch']
  #allocation2 [shape = 'f32[4,8,1]{2,1,0:T(8,128)}', space=vmem, size = 0x4000, scoped, tag = 'scratch operand']
  #allocation3 [shape = 'f32[4,8,1]{2,1,0:T(8,128)}', space=vmem, size = 0x4000, scoped, tag = 'scratch operand']
  #allocation4 [shape = 'f32[4,8,8]{2,1,0:T(8,128)}', space=vmem, size = 0x4000, scoped, tag = 'scratch operand']
  %s0 = inlined_call_operand.vmem [shape: f32[2,8,32], index: 0, kind: input, shape index: {}]
  %s1 = inlined_call_operand.vmem [shape: f32[2,8,32], index: 1, kind: input, shape index: {}]
  %s2 = inlined_call_operand.vmem [shape: f32[2,8,32], index: 2, kind: input, shape index: {}]
  %s3 = inlined_call_operand.vmem [shape: f32[2,8,32], index: 3, kind: output, shape index: {}]
  %s4 = sld [smem:[#allocation0]]
  $region61: #{multi_head_attention_forward.4} parent=0
    _
  %s6 = ssub.s32 1, %s4
  %s7 = scalar_select 0, %s6, %s4
  loop: start=0, step=1, limit=4
  $region2: #{multi_head_attention_forward.4} parent=0 // loop_pre_header
    _
  $region3: #{multi_head_attention_forward.4} parent=0 // loop_header
    %s9 = sphi 0, %s13
    %p10 = scmp.ge.s32.totalorder %s9, 4
    %s16 = sphi 0, %s35
    %s17 = sphi 0, %s31
    %s18 = sphi 0, %s27
    %s19 = sphi 0, %s16
    %s20 = sphi 0, %s17
    %s21 = sphi 0, %s18
    %s22 = sphi 0, %s19
    %s23 = sphi 0, %s20
    %s24 = sphi 0, %s21
    %s40 = sphi 0, %s42
    %s43 = sphi 0, %s40
    %s44 = sphi 0, %s43
    %s60 = sphi 0, %s44
    %s68 = sphi 0, %s70
    %s71 = sphi 0, %s68
    %s72 = sphi 0, %s71
    %s88 = sphi 0, %s72
    %s96 = sphi 0, %s98
    %s99 = sphi 0, %s96
    %s100 = sphi 0, %s99
    %s116 = sphi 0, %s100
    %s124 = sphi 0, %s126
    %s127 = sphi 0, %s124
    %s128 = sphi 0, %s127
    %s144 = sphi 0, %s128
  $region4: #{multi_head_attention_forward.4} parent=0 // loop_header_branch
    %12 = sbr.rel (%p10) target = $region8
  $region5: #{multi_head_attention_forward.4} parent=0 // loop_body
    %s14 = ssub.s32 %s9, 1
    %s15 = ssub.s32 %s9, 2
    %s25 = sadd.s32 1, %s18
    %p26 = scmp.ge.s32.totalorder %s25, 1
    %s27 = scalar_select %p26, 0, %s25
    %s28 = sadd.s32 1, %s17
    %s29 = scalar_select %p26, %s28, %s17
    %p30 = scmp.ge.s32.totalorder %s29, 1
    %s31 = scalar_select %p30, 0, %s29
    %s32 = sadd.s32 1, %s16
    %s33 = scalar_select %p30, %s32, %s16
    %p34 = scmp.ge.s32.totalorder %s33, 2
    %s35 = scalar_select %p34, 0, %s33
    %s36 = ssub.s32 %s16, %s35
    %s37 = ssub.s32 %s17, %s31
    %s38 = sor.u32 %s36, %s37
    %p39 = scmp.eq.s32.totalorder %s38, 0
    %s41 = sadd.s32 %s40, 1
    %s42 = scalar_select %p39, %s40, %s41
    %p45 = pneg %p39
    %p46 = scmp.eq.s32.totalorder %s9, 1
    %p47 = por %p45, %p46
    %p48 = scmp.ne.s32.totalorder %s40, %s43
    %p49 = scmp.eq.s32.totalorder %s9, 0
    %p50 = por %p48, %p49
    %p51 = scmp.ne.s32.totalorder %s40, %s43
    %p52 = scmp.eq.s32.totalorder %s14, 1
    %p53 = por %p51, %p52
    %p54 = scmp.ne.s32.totalorder %s43, %s44
    %p55 = scmp.eq.s32.totalorder %s14, 0
    %p56 = por %p54, %p55
    %p57 = scmp.ne.s32.totalorder %s43, %s44
    %p58 = scmp.eq.s32.totalorder %s15, 1
    %p59 = por %p57, %p58
    %p61 = scmp.ne.s32.totalorder %s44, %s60
    %p62 = scmp.eq.s32.totalorder %s15, 0
    %p63 = por %p61, %p62
    %s64 = ssub.s32 %s16, %s35
    %s65 = ssub.s32 %s18, %s27
    %s66 = sor.u32 %s64, %s65
    %p67 = scmp.eq.s32.totalorder %s66, 0
    %s69 = sadd.s32 %s68, 1
    %s70 = scalar_select %p67, %s68, %s69
    %p73 = pneg %p67
    %p74 = scmp.eq.s32.totalorder %s9, 1
    %p75 = por %p73, %p74
    %p76 = scmp.ne.s32.totalorder %s68, %s71
    %p77 = scmp.eq.s32.totalorder %s9, 0
    %p78 = por %p76, %p77
    %p79 = scmp.ne.s32.totalorder %s68, %s71
    %p80 = scmp.eq.s32.totalorder %s14, 1
    %p81 = por %p79, %p80
    %p82 = scmp.ne.s32.totalorder %s71, %s72
    %p83 = scmp.eq.s32.totalorder %s14, 0
    %p84 = por %p82, %p83
    %p85 = scmp.ne.s32.totalorder %s71, %s72
    %p86 = scmp.eq.s32.totalorder %s15, 1
    %p87 = por %p85, %p86
    %p89 = scmp.ne.s32.totalorder %s72, %s88
    %p90 = scmp.eq.s32.totalorder %s15, 0
    %p91 = por %p89, %p90
    %s92 = ssub.s32 %s16, %s35
    %s93 = ssub.s32 %s18, %s27
    %s94 = sor.u32 %s92, %s93
    %p95 = scmp.eq.s32.totalorder %s94, 0
    %s97 = sadd.s32 %s96, 1
    %s98 = scalar_select %p95, %s96, %s97
    %p101 = pneg %p95
    %p102 = scmp.eq.s32.totalorder %s9, 1
    %p103 = por %p101, %p102
    %p104 = scmp.ne.s32.totalorder %s96, %s99
    %p105 = scmp.eq.s32.totalorder %s9, 0
    %p106 = por %p104, %p105
    %p107 = scmp.ne.s32.totalorder %s96, %s99
    %p108 = scmp.eq.s32.totalorder %s14, 1
    %p109 = por %p107, %p108
    %p110 = scmp.ne.s32.totalorder %s99, %s100
    %p111 = scmp.eq.s32.totalorder %s14, 0
    %p112 = por %p110, %p111
    %p113 = scmp.ne.s32.totalorder %s99, %s100
    %p114 = scmp.eq.s32.totalorder %s15, 1
    %p115 = por %p113, %p114
    %p117 = scmp.ne.s32.totalorder %s100, %s116
    %p118 = scmp.eq.s32.totalorder %s15, 0
    %p119 = por %p117, %p118
    %s120 = ssub.s32 %s16, %s35
    %s121 = ssub.s32 %s17, %s31
    %s122 = sor.u32 %s120, %s121
    %p123 = scmp.eq.s32.totalorder %s122, 0
    %s125 = sadd.s32 %s124, 1
    %s126 = scalar_select %p123, %s124, %s125
    %p129 = pneg %p123
    %p130 = scmp.eq.s32.totalorder %s9, 1
    %p131 = por %p129, %p130
    %p132 = scmp.ne.s32.totalorder %s124, %s127
    %p133 = scmp.eq.s32.totalorder %s9, 0
    %p134 = por %p132, %p133
    %p135 = scmp.ne.s32.totalorder %s124, %s127
    %p136 = scmp.eq.s32.totalorder %s14, 1
    %p137 = por %p135, %p136
    %p138 = scmp.ne.s32.totalorder %s127, %s128
    %p139 = scmp.eq.s32.totalorder %s14, 0
    %p140 = por %p138, %p139
    %p141 = scmp.ne.s32.totalorder %s127, %s128
    %p142 = scmp.eq.s32.totalorder %s15, 1
    %p143 = por %p141, %p142
    %p145 = scmp.ne.s32.totalorder %s128, %s144
    %p146 = scmp.eq.s32.totalorder %s15, 0
    %p147 = por %p145, %p146
    %p148 = scmp.le.s32.totalorder 1, %s9
    %p149 = scmp.lt.s32.totalorder %s9, 3
    %p150 = pnand %p148, %p149
    %p151 = pneg %p150
    // Predicated region
    $region9: #{multi_head_attention_forward.4} parent=5 // pred_check
      _
    $region10: #{multi_head_attention_forward.4} parent=5 // pred_check_branch
      %153 = sbr.rel (%p150) target = $region12
    $region11: #{multi_head_attention_forward.4} parent=5 // pred_region
      %s154 = ssub.s32 %s9, 1
    $region12: #{multi_head_attention_forward.4} parent=5 // pred_fallthru
      _
    %p155 = scmp.lt.s32.totalorder %s9, 2
    // Predicated region
    $region13: #{multi_head_attention_forward.4} parent=5 // pred_check
      %p156 = pneg %p155
    $region14: #{multi_head_attention_forward.4} parent=5 // pred_check_branch
      %158 = sbr.rel (%p156) target = $region16
    $region15: #{multi_head_attention_forward.4} parent=5 // pred_region
      // Predicated region
      $region17: #{multi_head_attention_forward.4} parent=15 // pred_check
        %p159 = pneg %p50
      $region18: #{multi_head_attention_forward.4} parent=15 // pred_check_branch
        %161 = sbr.rel (%p159) target = $region20
      $region19: #{multi_head_attention_forward.4} parent=15 // pred_region
        %p162 = scmp.lt.s32.totalorder %s16, 1
        %s163 = scalar_select %p162, %s16, 1
        %p164 = scmp.lt.s32.totalorder %s17, 0
        %s165 = scalar_select %p164, %s17, 0
        %s166 = sadd.s32 %s165, %s163
        %s167 = smul.addr %s166, 8
        %s168 = scalar_lea.vmem %s0, %s167
      $region20: #{multi_head_attention_forward.4} parent=15 // pred_fallthru
        _
      // Predicated region
      $region21: #{multi_head_attention_forward.4} parent=15 // pred_check
        %p169 = pneg %p78
      $region22: #{multi_head_attention_forward.4} parent=15 // pred_check_branch
        %171 = sbr.rel (%p169) target = $region24
      $region23: #{multi_head_attention_forward.4} parent=15 // pred_region
        %p172 = scmp.lt.s32.totalorder %s16, 1
        %s173 = scalar_select %p172, %s16, 1
        %p174 = scmp.lt.s32.totalorder %s18, 0
        %s175 = scalar_select %p174, %s18, 0
        %s176 = sadd.s32 %s175, %s173
        %s177 = smul.addr %s176, 8
        %s178 = scalar_lea.vmem %s1, %s177
      $region24: #{multi_head_attention_forward.4} parent=15 // pred_fallthru
        _
      // Predicated region
      $region25: #{multi_head_attention_forward.4} parent=15 // pred_check
        %p179 = pneg %p106
      $region26: #{multi_head_attention_forward.4} parent=15 // pred_check_branch
        %181 = sbr.rel (%p179) target = $region28
      $region27: #{multi_head_attention_forward.4} parent=15 // pred_region
        %p182 = scmp.lt.s32.totalorder %s16, 1
        %s183 = scalar_select %p182, %s16, 1
        %p184 = scmp.lt.s32.totalorder %s18, 0
        %s185 = scalar_select %p184, %s18, 0
        %s186 = sadd.s32 %s185, %s183
        %s187 = smul.addr %s186, 8
        %s188 = scalar_lea.vmem %s2, %s187
      $region28: #{multi_head_attention_forward.4} parent=15 // pred_fallthru
        _
    $region16: #{multi_head_attention_forward.4} parent=5 // pred_fallthru
      _
    %p189 = scmp.le.s32.totalorder 1, %s9
    %p190 = scmp.lt.s32.totalorder %s9, 3
    %p191 = pnand %p189, %p190
    %p192 = pneg %p191
    // Predicated region
    $region29: #{multi_head_attention_forward.4} parent=5 // pred_check
      _
    $region30: #{multi_head_attention_forward.4} parent=5 // pred_check_branch
      %194 = sbr.rel (%p191) target = $region32
    $region31: #{multi_head_attention_forward.4} parent=5 // pred_region
      %s195 = ssub.s32 %s9, 1
      %p196 = scmp.lt.s32.totalorder %s19, 1
      %s197 = scalar_select %p196, %s19, 1
      %p198 = scmp.lt.s32.totalorder %s20, 0
      %s199 = scalar_select %p198, %s20, 0
      %s200 = sadd.s32 %s199, %s197
      %s201 = smul.addr %s200, 8
      %s202 = scalar_lea.vmem %s0, %s201
      %p203 = pneg %p56
      %p204 = pneg %p53
      %p205 = scmp.lt.s32.totalorder %s19, 1
      %s206 = scalar_select %p205, %s19, 1
      %p207 = scmp.lt.s32.totalorder %s21, 0
      %s208 = scalar_select %p207, %s21, 0
      %s209 = sadd.s32 %s208, %s206
      %s210 = smul.addr %s209, 8
      %s211 = scalar_lea.vmem %s1, %s210
      %p212 = pneg %p84
      %p213 = pneg %p81
      %p214 = scmp.lt.s32.totalorder %s19, 1
      %s215 = scalar_select %p214, %s19, 1
      %p216 = scmp.lt.s32.totalorder %s21, 0
      %s217 = scalar_select %p216, %s21, 0
      %s218 = sadd.s32 %s217, %s215
      %s219 = smul.addr %s218, 8
      %s220 = scalar_lea.vmem %s2, %s219
      %p221 = pneg %p112
      %p222 = pneg %p109
      %p223 = pneg %p140
      %p224 = pneg %p137
      %p225 = scmp.lt.s32.totalorder %s19, 1
      %s226 = scalar_select %p225, %s19, 1
      %p227 = scmp.lt.s32.totalorder %s20, 0
      %s228 = scalar_select %p227, %s20, 0
      %s229 = sadd.s32 %s228, %s226
      %s230 = smul.addr %s229, 8
      %s231 = scalar_lea.vmem %s3, %s230
      %p232 = scmp.lt.s32.totalorder %s19, 1
      %s233 = scalar_select %p232, %s19, 1
      %p234 = scmp.lt.s32.totalorder %s20, 0
      %s235 = scalar_select %p234, %s20, 0
      %s236 = sadd.s32 %s235, %s233
      %s237 = smul.addr %s236, 8
      %s238 = scalar_lea.vmem %s0, %s237
      %p239 = scmp.lt.s32.totalorder %s19, 1
      %s240 = scalar_select %p239, %s19, 1
      %p241 = scmp.lt.s32.totalorder %s21, 0
      %s242 = scalar_select %p241, %s21, 0
      %s243 = sadd.s32 %s242, %s240
      %s244 = smul.addr %s243, 8
      %s245 = scalar_lea.vmem %s1, %s244
      %p246 = scmp.lt.s32.totalorder %s19, 1
      %s247 = scalar_select %p246, %s19, 1
      %p248 = scmp.lt.s32.totalorder %s21, 0
      %s249 = scalar_select %p248, %s21, 0
      %s250 = sadd.s32 %s249, %s247
      %s251 = smul.addr %s250, 8
      %s252 = scalar_lea.vmem %s2, %s251
      %p253 = scmp.lt.s32.totalorder %s19, 1
      %s254 = scalar_select %p253, %s19, 1
      %p255 = scmp.lt.s32.totalorder %s20, 0
      %s256 = scalar_select %p255, %s20, 0
      %s257 = sadd.s32 %s256, %s254
      %s258 = smul.addr %s257, 8
      %s259 = scalar_lea.vmem %s3, %s258
      %p260 = scmp.eq.s32.totalorder %s21, 0
      // Predicated region
      $region33: #{multi_head_attention_forward.4} parent=31 // pred_check
        %p261 = pneg %p260
      $region34: #{multi_head_attention_forward.4} parent=31 // pred_check_branch
        %263 = sbr.rel (%p261) target = $region36
      $region35: #{multi_head_attention_forward.4} parent=31 // pred_region
        %vm264 = vcmask 7168
        %265 = vst.msk [vmem:[#allocation2] sm:$0xff] %vm264, -inf
        %266 = vst.msk [vmem:[#allocation2 + $0x8] sm:$0xff] %vm264, -inf
        %267 = vst.msk [vmem:[#allocation2 + $0x10] sm:$0xff] %vm264, -inf
        %268 = vst.msk [vmem:[#allocation2 + $0x18] sm:$0xff] %vm264, -inf
        %269 = vst.msk [vmem:[#allocation3] sm:$0xff] %vm264, 0.0
        %270 = vst.msk [vmem:[#allocation3 + $0x8] sm:$0xff] %vm264, 0.0
        %271 = vst.msk [vmem:[#allocation3 + $0x10] sm:$0xff] %vm264, 0.0
        %272 = vst.msk [vmem:[#allocation3 + $0x18] sm:$0xff] %vm264, 0.0
        %vm273 = vcmask 64512
        %274 = vst.msk [vmem:[#allocation4] sm:$0xff] %vm273, 0.0
        %275 = vst.msk [vmem:[#allocation4 + $0x8] sm:$0xff] %vm273, 0.0
        %276 = vst.msk [vmem:[#allocation4 + $0x10] sm:$0xff] %vm273, 0.0
        %277 = vst.msk [vmem:[#allocation4 + $0x18] sm:$0xff] %vm273, 0.0
      $region36: #{multi_head_attention_forward.4} parent=31 // pred_fallthru
        _
      %p278 = scmp.lt.s32.totalorder %s21, %s20
      // Predicated region
      $region37: #{multi_head_attention_forward.4} parent=31 // pred_check
        %p279 = pneg %p278
      $region38: #{multi_head_attention_forward.4} parent=31 // pred_check_branch
        %281 = sbr.rel (%p279) target = $region40
      $region39: #{multi_head_attention_forward.4} parent=31 // pred_region
        %v282 = vld [vmem:[%s238] sm:$0xff]
        %v283 = vmul.f32 %v282, 0.35355338
        %v284 = vld [vmem:[%s245] sm:$0xff]
        %v285 = vld [vmem:[%s252] sm:$0xff]
        %vm286 = vcmask 64512
        %v288 = vsel %vm286, %v283, 0
        %v291 = vsel %vm286, %v284, 0
        %293 = vmatpush.xpose.msra.mxu0 0.0
        %294 = vmatpush.xpose.msra.mxu0 0.0
        %295 = vmatpush.xpose.msra.mxu0 0.0
        %296 = vmatpush.xpose.msra.mxu0 0.0
        %297 = vmatpush.xpose.msra.mxu0 0.0
        %298 = vmatpush.xpose.msra.mxu0 0.0
        %299 = vmatpush.xpose.msra.mxu0 0.0
        %300 = vmatpush.xpose.msra.mxu0 0.0
        %301 = vmatpush.xpose.msra.mxu0 0.0
        %302 = vmatpush.xpose.msra.mxu0 0.0
        %303 = vmatpush.xpose.msra.mxu0 0.0
        %304 = vmatpush.xpose.msra.mxu0 0.0
        %305 = vmatpush.xpose.msra.mxu0 0.0
        %306 = vmatpush.xpose.msra.mxu0 0.0
        %307 = vmatpush.xpose.msra.mxu0 0.0
        %308 = vmatpush.xpose.msra.mxu0 %v291
        %309 = vmatmul.f32.gmra.mxu0 %v288
        %v310 = vpop.f32.mrf.mxu0
        %v311 = vadd.f32 0.0, %v310
        %312 = vdwg.mxu0
        %v313 = vld [vmem:[#allocation2] sm:$0xff]
        %v314 = vsel %vm286, %v311, -inf
        %315 = vmax.xlane.f32.xlu0 %v314
        %v316 = vpop.xlane.xlu0 %315
        %v317 = vmax.f32 %v313, %v316
        %v318 = vsub.f32 %v313, %v317
        %v319 = vmul.f32 %v318, 1.442695
        %v320 = vpow.pop %v319
        %322 = vset.pattern.permute.xlu0 0
        %323 = vperm.xlu0 %322, %v317
        %v324 = vpop.permute.xlu0 %323
        %v326 = vsub.f32 %v311, %v324
        %v327 = vmul.f32 %v326, 1.442695
        %v328 = vpow.pop %v327
        %v329 = vld [vmem:[#allocation3] sm:$0xff]
        %v330 = vmul.f32 %v320, %v329
        %v331 = vsel %vm286, %v328, 0.0
        %332 = vadd.xlane.f32.xlu0 %v331
        %v333 = vpop.xlane.xlu0 %332
        %v334 = vadd.f32 %v330, %v333
        %vm335 = vcmask 7168
        %336 = vst.msk [vmem:[#allocation3] sm:$0xff] %vm335, %v334
        %v337 = vld [vmem:[#allocation4] sm:$0xff]
        %339 = vset.pattern.permute.xlu0 0
        %340 = vperm.xlu0 %339, %v320
        %v341 = vpop.permute.xlu0 %340
        %v343 = vmul.f32 %v341, %v337
        %v345 = vsel %vm286, %v328, 0
        %347 = vmatpush.msra.mxu0 0.0
        %348 = vmatpush.msra.mxu0 0.0
        %349 = vmatpush.msra.mxu0 0.0
        %350 = vmatpush.msra.mxu0 0.0
        %351 = vmatpush.msra.mxu0 0.0
        %352 = vmatpush.msra.mxu0 0.0
        %353 = vmatpush.msra.mxu0 0.0
        %354 = vmatpush.msra.mxu0 0.0
        %355 = vmatpush.msra.mxu0 0.0
        %356 = vmatpush.msra.mxu0 0.0
        %357 = vmatpush.msra.mxu0 0.0
        %358 = vmatpush.msra.mxu0 0.0
        %359 = vmatpush.msra.mxu0 0.0
        %360 = vmatpush.msra.mxu0 0.0
        %361 = vmatpush.msra.mxu0 0.0
        %362 = vmatpush.msra.mxu0 %v285
        %363 = vmatmul.f32.gmra.mxu0 %v345
        %v364 = vpop.f32.mrf.mxu0
        %v365 = vadd.f32 0.0, %v364
        %366 = vdwg.mxu0
        %v367 = vadd.f32 %v343, %v365
        %368 = vst.msk [vmem:[#allocation4] sm:$0xff] %vm286, %v367
        %369 = vst.msk [vmem:[#allocation2] sm:$0xff] %vm335, %v317
        %370 = vrot.lane.b32.xlu0 %v283, 120
        %v371 = vpop.permute.xlu0 %370
        %372 = vrot.lane.b32.xlu0 %v284, 120
        %v373 = vpop.permute.xlu0 %372
        %v374 = vsel %vm286, %v371, 0
        %v376 = vsel %vm286, %v373, 0
        %378 = vmatpush.xpose.msra.mxu0 0.0
        %379 = vmatpush.xpose.msra.mxu0 0.0
        %380 = vmatpush.xpose.msra.mxu0 0.0
        %381 = vmatpush.xpose.msra.mxu0 0.0
        %382 = vmatpush.xpose.msra.mxu0 0.0
        %383 = vmatpush.xpose.msra.mxu0 0.0
        %384 = vmatpush.xpose.msra.mxu0 0.0
        %385 = vmatpush.xpose.msra.mxu0 0.0
        %386 = vmatpush.xpose.msra.mxu0 0.0
        %387 = vmatpush.xpose.msra.mxu0 0.0
        %388 = vmatpush.xpose.msra.mxu0 0.0
        %389 = vmatpush.xpose.msra.mxu0 0.0
        %390 = vmatpush.xpose.msra.mxu0 0.0
        %391 = vmatpush.xpose.msra.mxu0 0.0
        %392 = vmatpush.xpose.msra.mxu0 0.0
        %393 = vmatpush.xpose.msra.mxu0 %v376
        %394 = vmatmul.f32.gmra.mxu0 %v374
        %v395 = vpop.f32.mrf.mxu0
        %v396 = vadd.f32 0.0, %v395
        %397 = vdwg.mxu0
        %s398 = scalar_lea.vmem [#allocation2], 8
        %v399 = vld [vmem:[%s398] sm:$0xff]
        %v400 = vsel %vm286, %v396, -inf
        %401 = vmax.xlane.f32.xlu0 %v400
        %v402 = vpop.xlane.xlu0 %401
        %v403 = vmax.f32 %v399, %v402
        %v404 = vsub.f32 %v399, %v403
        %v405 = vmul.f32 %v404, 1.442695
        %v406 = vpow.pop %v405
        %408 = vset.pattern.permute.xlu0 0
        %409 = vperm.xlu0 %408, %v403
        %v410 = vpop.permute.xlu0 %409
        %v412 = vsub.f32 %v396, %v410
        %v413 = vmul.f32 %v412, 1.442695
        %v414 = vpow.pop %v413
        %s415 = scalar_lea.vmem [#allocation3], 8
        %v416 = vld [vmem:[%s415] sm:$0xff]
        %v417 = vmul.f32 %v406, %v416
        %v418 = vsel %vm286, %v414, 0.0
        %419 = vadd.xlane.f32.xlu0 %v418
        %v420 = vpop.xlane.xlu0 %419
        %v421 = vadd.f32 %v417, %v420
        %422 = vst.msk [vmem:[%s415] sm:$0xff] %vm335, %v421
        %s423 = scalar_lea.vmem [#allocation4], 8
        %v424 = vld [vmem:[%s423] sm:$0xff]
        %426 = vset.pattern.permute.xlu0 0
        %427 = vperm.xlu0 %426, %v406
        %v428 = vpop.permute.xlu0 %427
        %v430 = vmul.f32 %v428, %v424
        %432 = vrot.lane.b32.xlu0 %v285, 120
        %v433 = vpop.permute.xlu0 %432
        %v436 = vsel %vm286, %v414, 0
        %438 = vmatpush.msra.mxu0 0.0
        %439 = vmatpush.msra.mxu0 0.0
        %440 = vmatpush.msra.mxu0 0.0
        %441 = vmatpush.msra.mxu0 0.0
        %442 = vmatpush.msra.mxu0 0.0
        %443 = vmatpush.msra.mxu0 0.0
        %444 = vmatpush.msra.mxu0 0.0
        %445 = vmatpush.msra.mxu0 0.0
        %446 = vmatpush.msra.mxu0 0.0
        %447 = vmatpush.msra.mxu0 0.0
        %448 = vmatpush.msra.mxu0 0.0
        %449 = vmatpush.msra.mxu0 0.0
        %450 = vmatpush.msra.mxu0 0.0
        %451 = vmatpush.msra.mxu0 0.0
        %452 = vmatpush.msra.mxu0 0.0
        %453 = vmatpush.msra.mxu0 %v433
        %454 = vmatmul.f32.gmra.mxu0 %v436
        %v455 = vpop.f32.mrf.mxu0
        %v456 = vadd.f32 0.0, %v455
        %457 = vdwg.mxu0
        %v458 = vadd.f32 %v430, %v456
        %459 = vst.msk [vmem:[%s423] sm:$0xff] %vm286, %v458
        %460 = vst.msk [vmem:[%s398] sm:$0xff] %vm335, %v403
        %461 = vrot.lane.b32.xlu0 %v283, 112
        %v462 = vpop.permute.xlu0 %461
        %463 = vrot.lane.b32.xlu0 %v284, 112
        %v464 = vpop.permute.xlu0 %463
        %v465 = vsel %vm286, %v462, 0
        %v467 = vsel %vm286, %v464, 0
        %469 = vmatpush.xpose.msra.mxu0 0.0
        %470 = vmatpush.xpose.msra.mxu0 0.0
        %471 = vmatpush.xpose.msra.mxu0 0.0
        %472 = vmatpush.xpose.msra.mxu0 0.0
        %473 = vmatpush.xpose.msra.mxu0 0.0
        %474 = vmatpush.xpose.msra.mxu0 0.0
        %475 = vmatpush.xpose.msra.mxu0 0.0
        %476 = vmatpush.xpose.msra.mxu0 0.0
        %477 = vmatpush.xpose.msra.mxu0 0.0
        %478 = vmatpush.xpose.msra.mxu0 0.0
        %479 = vmatpush.xpose.msra.mxu0 0.0
        %480 = vmatpush.xpose.msra.mxu0 0.0
        %481 = vmatpush.xpose.msra.mxu0 0.0
        %482 = vmatpush.xpose.msra.mxu0 0.0
        %483 = vmatpush.xpose.msra.mxu0 0.0
        %484 = vmatpush.xpose.msra.mxu0 %v467
        %485 = vmatmul.f32.gmra.mxu0 %v465
        %v486 = vpop.f32.mrf.mxu0
        %v487 = vadd.f32 0.0, %v486
        %488 = vdwg.mxu0
        %s489 = scalar_lea.vmem [#allocation2], 16
        %v490 = vld [vmem:[%s489] sm:$0xff]
        %v491 = vsel %vm286, %v487, -inf
        %492 = vmax.xlane.f32.xlu0 %v491
        %v493 = vpop.xlane.xlu0 %492
        %v494 = vmax.f32 %v490, %v493
        %v495 = vsub.f32 %v490, %v494
        %v496 = vmul.f32 %v495, 1.442695
        %v497 = vpow.pop %v496
        %499 = vset.pattern.permute.xlu0 0
        %500 = vperm.xlu0 %499, %v494
        %v501 = vpop.permute.xlu0 %500
        %v503 = vsub.f32 %v487, %v501
        %v504 = vmul.f32 %v503, 1.442695
        %v505 = vpow.pop %v504
        %s506 = scalar_lea.vmem [#allocation3], 16
        %v507 = vld [vmem:[%s506] sm:$0xff]
        %v508 = vmul.f32 %v497, %v507
        %v509 = vsel %vm286, %v505, 0.0
        %510 = vadd.xlane.f32.xlu0 %v509
        %v511 = vpop.xlane.xlu0 %510
        %v512 = vadd.f32 %v508, %v511
        %513 = vst.msk [vmem:[%s506] sm:$0xff] %vm335, %v512
        %s514 = scalar_lea.vmem [#allocation4], 16
        %v515 = vld [vmem:[%s514] sm:$0xff]
        %517 = vset.pattern.permute.xlu0 0
        %518 = vperm.xlu0 %517, %v497
        %v519 = vpop.permute.xlu0 %518
        %v521 = vmul.f32 %v519, %v515
        %522 = vrot.lane.b32.xlu0 %v285, 112
        %v523 = vpop.permute.xlu0 %522
        %v526 = vsel %vm286, %v505, 0
        %528 = vmatpush.msra.mxu0 0.0
        %529 = vmatpush.msra.mxu0 0.0
        %530 = vmatpush.msra.mxu0 0.0
        %531 = vmatpush.msra.mxu0 0.0
        %532 = vmatpush.msra.mxu0 0.0
        %533 = vmatpush.msra.mxu0 0.0
        %534 = vmatpush.msra.mxu0 0.0
        %535 = vmatpush.msra.mxu0 0.0
        %536 = vmatpush.msra.mxu0 0.0
        %537 = vmatpush.msra.mxu0 0.0
        %538 = vmatpush.msra.mxu0 0.0
        %539 = vmatpush.msra.mxu0 0.0
        %540 = vmatpush.msra.mxu0 0.0
        %541 = vmatpush.msra.mxu0 0.0
        %542 = vmatpush.msra.mxu0 0.0
        %543 = vmatpush.msra.mxu0 %v523
        %544 = vmatmul.f32.gmra.mxu0 %v526
        %v545 = vpop.f32.mrf.mxu0
        %v546 = vadd.f32 0.0, %v545
        %547 = vdwg.mxu0
        %v548 = vadd.f32 %v521, %v546
        %549 = vst.msk [vmem:[%s514] sm:$0xff] %vm286, %v548
        %550 = vst.msk [vmem:[%s489] sm:$0xff] %vm335, %v494
        %551 = vrot.lane.b32.xlu0 %v283, 104
        %v552 = vpop.permute.xlu0 %551
        %553 = vrot.lane.b32.xlu0 %v284, 104
        %v554 = vpop.permute.xlu0 %553
        %v555 = vsel %vm286, %v552, 0
        %v557 = vsel %vm286, %v554, 0
        %559 = vmatpush.xpose.msra.mxu0 0.0
        %560 = vmatpush.xpose.msra.mxu0 0.0
        %561 = vmatpush.xpose.msra.mxu0 0.0
        %562 = vmatpush.xpose.msra.mxu0 0.0
        %563 = vmatpush.xpose.msra.mxu0 0.0
        %564 = vmatpush.xpose.msra.mxu0 0.0
        %565 = vmatpush.xpose.msra.mxu0 0.0
        %566 = vmatpush.xpose.msra.mxu0 0.0
        %567 = vmatpush.xpose.msra.mxu0 0.0
        %568 = vmatpush.xpose.msra.mxu0 0.0
        %569 = vmatpush.xpose.msra.mxu0 0.0
        %570 = vmatpush.xpose.msra.mxu0 0.0
        %571 = vmatpush.xpose.msra.mxu0 0.0
        %572 = vmatpush.xpose.msra.mxu0 0.0
        %573 = vmatpush.xpose.msra.mxu0 0.0
        %574 = vmatpush.xpose.msra.mxu0 %v557
        %575 = vmatmul.f32.gmra.mxu0 %v555
        %v576 = vpop.f32.mrf.mxu0
        %v577 = vadd.f32 0.0, %v576
        %578 = vdwg.mxu0
        %s579 = scalar_lea.vmem [#allocation2], 24
        %v580 = vld [vmem:[%s579] sm:$0xff]
        %v581 = vsel %vm286, %v577, -inf
        %582 = vmax.xlane.f32.xlu0 %v581
        %v583 = vpop.xlane.xlu0 %582
        %v584 = vmax.f32 %v580, %v583
        %v585 = vsub.f32 %v580, %v584
        %v586 = vmul.f32 %v585, 1.442695
        %v587 = vpow.pop %v586
        %589 = vset.pattern.permute.xlu0 0
        %590 = vperm.xlu0 %589, %v584
        %v591 = vpop.permute.xlu0 %590
        %v593 = vsub.f32 %v577, %v591
        %v594 = vmul.f32 %v593, 1.442695
        %v595 = vpow.pop %v594
        %s596 = scalar_lea.vmem [#allocation3], 24
        %v597 = vld [vmem:[%s596] sm:$0xff]
        %v598 = vmul.f32 %v587, %v597
        %v599 = vsel %vm286, %v595, 0.0
        %600 = vadd.xlane.f32.xlu0 %v599
        %v601 = vpop.xlane.xlu0 %600
        %v602 = vadd.f32 %v598, %v601
        %603 = vst.msk [vmem:[%s596] sm:$0xff] %vm335, %v602
        %s604 = scalar_lea.vmem [#allocation4], 24
        %v605 = vld [vmem:[%s604] sm:$0xff]
        %607 = vset.pattern.permute.xlu0 0
        %608 = vperm.xlu0 %607, %v587
        %v609 = vpop.permute.xlu0 %608
        %v611 = vmul.f32 %v609, %v605
        %612 = vrot.lane.b32.xlu0 %v285, 104
        %v613 = vpop.permute.xlu0 %612
        %v616 = vsel %vm286, %v595, 0
        %618 = vmatpush.msra.mxu0 0.0
        %619 = vmatpush.msra.mxu0 0.0
        %620 = vmatpush.msra.mxu0 0.0
        %621 = vmatpush.msra.mxu0 0.0
        %622 = vmatpush.msra.mxu0 0.0
        %623 = vmatpush.msra.mxu0 0.0
        %624 = vmatpush.msra.mxu0 0.0
        %625 = vmatpush.msra.mxu0 0.0
        %626 = vmatpush.msra.mxu0 0.0
        %627 = vmatpush.msra.mxu0 0.0
        %628 = vmatpush.msra.mxu0 0.0
        %629 = vmatpush.msra.mxu0 0.0
        %630 = vmatpush.msra.mxu0 0.0
        %631 = vmatpush.msra.mxu0 0.0
        %632 = vmatpush.msra.mxu0 0.0
        %633 = vmatpush.msra.mxu0 %v613
        %634 = vmatmul.f32.gmra.mxu0 %v616
        %v635 = vpop.f32.mrf.mxu0
        %v636 = vadd.f32 0.0, %v635
        %637 = vdwg.mxu0
        %v638 = vadd.f32 %v611, %v636
        %639 = vst.msk [vmem:[%s604] sm:$0xff] %vm286, %v638
        %640 = vst.msk [vmem:[%s579] sm:$0xff] %vm335, %v584
      $region40: #{multi_head_attention_forward.4} parent=31 // pred_fallthru
        _
      %p641 = scmp.eq.s32.totalorder %s21, %s20
      // Predicated region
      $region41: #{multi_head_attention_forward.4} parent=31 // pred_check
        %p642 = pneg %p641
      $region42: #{multi_head_attention_forward.4} parent=31 // pred_check_branch
        %644 = sbr.rel (%p642) target = $region44
      $region43: #{multi_head_attention_forward.4} parent=31 // pred_region
        %v645 = vld [vmem:[%s238] sm:$0xff]
        %v646 = vmul.f32 %v645, 0.35355338
        %v647 = vld [vmem:[%s245] sm:$0xff]
        %v648 = vld [vmem:[%s252] sm:$0xff]
        %v649 = vlaneseq
        %v650 = vshrl.u32 %v649, 7
        %v651 = vlaneseq
        %v652 = vand.u32 %v651, 127
        %vm653 = vcmp.le.s32.totalorder %v652, %v650
        %vm654 = vcmask 64512
        %v656 = vsel %vm654, %v646, 0
        %v659 = vsel %vm654, %v647, 0
        %661 = vmatpush.xpose.msra.mxu0 0.0
        %662 = vmatpush.xpose.msra.mxu0 0.0
        %663 = vmatpush.xpose.msra.mxu0 0.0
        %664 = vmatpush.xpose.msra.mxu0 0.0
        %665 = vmatpush.xpose.msra.mxu0 0.0
        %666 = vmatpush.xpose.msra.mxu0 0.0
        %667 = vmatpush.xpose.msra.mxu0 0.0
        %668 = vmatpush.xpose.msra.mxu0 0.0
        %669 = vmatpush.xpose.msra.mxu0 0.0
        %670 = vmatpush.xpose.msra.mxu0 0.0
        %671 = vmatpush.xpose.msra.mxu0 0.0
        %672 = vmatpush.xpose.msra.mxu0 0.0
        %673 = vmatpush.xpose.msra.mxu0 0.0
        %674 = vmatpush.xpose.msra.mxu0 0.0
        %675 = vmatpush.xpose.msra.mxu0 0.0
        %676 = vmatpush.xpose.msra.mxu0 %v659
        %677 = vmatmul.f32.gmra.mxu0 %v656
        %v678 = vpop.f32.mrf.mxu0
        %v679 = vadd.f32 0.0, %v678
        %680 = vdwg.mxu0
        %v681 = vsel %vm653, %v679, -1e+30
        %v682 = vld [vmem:[#allocation2] sm:$0xff]
        %v683 = vsel %vm654, %v681, -inf
        %684 = vmax.xlane.f32.xlu0 %v683
        %v685 = vpop.xlane.xlu0 %684
        %v686 = vmax.f32 %v682, %v685
        %v687 = vsub.f32 %v682, %v686
        %v688 = vmul.f32 %v687, 1.442695
        %v689 = vpow.pop %v688
        %691 = vset.pattern.permute.xlu0 0
        %692 = vperm.xlu0 %691, %v686
        %v693 = vpop.permute.xlu0 %692
        %v695 = vsub.f32 %v681, %v693
        %v696 = vmul.f32 %v695, 1.442695
        %v697 = vpow.pop %v696
        %v698 = vld [vmem:[#allocation3] sm:$0xff]
        %v699 = vmul.f32 %v689, %v698
        %v700 = vsel %vm654, %v697, 0.0
        %701 = vadd.xlane.f32.xlu0 %v700
        %v702 = vpop.xlane.xlu0 %701
        %v703 = vadd.f32 %v699, %v702
        %vm704 = vcmask 7168
        %705 = vst.msk [vmem:[#allocation3] sm:$0xff] %vm704, %v703
        %v706 = vld [vmem:[#allocation4] sm:$0xff]
        %708 = vset.pattern.permute.xlu0 0
        %709 = vperm.xlu0 %708, %v689
        %v710 = vpop.permute.xlu0 %709
        %v712 = vmul.f32 %v710, %v706
        %v714 = vsel %vm654, %v697, 0
        %716 = vmatpush.msra.mxu0 0.0
        %717 = vmatpush.msra.mxu0 0.0
        %718 = vmatpush.msra.mxu0 0.0
        %719 = vmatpush.msra.mxu0 0.0
        %720 = vmatpush.msra.mxu0 0.0
        %721 = vmatpush.msra.mxu0 0.0
        %722 = vmatpush.msra.mxu0 0.0
        %723 = vmatpush.msra.mxu0 0.0
        %724 = vmatpush.msra.mxu0 0.0
        %725 = vmatpush.msra.mxu0 0.0
        %726 = vmatpush.msra.mxu0 0.0
        %727 = vmatpush.msra.mxu0 0.0
        %728 = vmatpush.msra.mxu0 0.0
        %729 = vmatpush.msra.mxu0 0.0
        %730 = vmatpush.msra.mxu0 0.0
        %731 = vmatpush.msra.mxu0 %v648
        %732 = vmatmul.f32.gmra.mxu0 %v714
        %v733 = vpop.f32.mrf.mxu0
        %v734 = vadd.f32 0.0, %v733
        %735 = vdwg.mxu0
        %v736 = vadd.f32 %v712, %v734
        %737 = vst.msk [vmem:[#allocation4] sm:$0xff] %vm654, %v736
        %738 = vst.msk [vmem:[#allocation2] sm:$0xff] %vm704, %v686
        %739 = vrot.lane.b32.xlu0 %v646, 120
        %v740 = vpop.permute.xlu0 %739
        %741 = vrot.lane.b32.xlu0 %v647, 120
        %v742 = vpop.permute.xlu0 %741
        %v743 = vsel %vm654, %v740, 0
        %v745 = vsel %vm654, %v742, 0
        %747 = vmatpush.xpose.msra.mxu0 0.0
        %748 = vmatpush.xpose.msra.mxu0 0.0
        %749 = vmatpush.xpose.msra.mxu0 0.0
        %750 = vmatpush.xpose.msra.mxu0 0.0
        %751 = vmatpush.xpose.msra.mxu0 0.0
        %752 = vmatpush.xpose.msra.mxu0 0.0
        %753 = vmatpush.xpose.msra.mxu0 0.0
        %754 = vmatpush.xpose.msra.mxu0 0.0
        %755 = vmatpush.xpose.msra.mxu0 0.0
        %756 = vmatpush.xpose.msra.mxu0 0.0
        %757 = vmatpush.xpose.msra.mxu0 0.0
        %758 = vmatpush.xpose.msra.mxu0 0.0
        %759 = vmatpush.xpose.msra.mxu0 0.0
        %760 = vmatpush.xpose.msra.mxu0 0.0
        %761 = vmatpush.xpose.msra.mxu0 0.0
        %762 = vmatpush.xpose.msra.mxu0 %v745
        %763 = vmatmul.f32.gmra.mxu0 %v743
        %v764 = vpop.f32.mrf.mxu0
        %v765 = vadd.f32 0.0, %v764
        %766 = vdwg.mxu0
        %v767 = vsel %vm653, %v765, -1e+30
        %s768 = scalar_lea.vmem [#allocation2], 8
        %v769 = vld [vmem:[%s768] sm:$0xff]
        %v770 = vsel %vm654, %v767, -inf
        %771 = vmax.xlane.f32.xlu0 %v770
        %v772 = vpop.xlane.xlu0 %771
        %v773 = vmax.f32 %v769, %v772
        %v774 = vsub.f32 %v769, %v773
        %v775 = vmul.f32 %v774, 1.442695
        %v776 = vpow.pop %v775
        %778 = vset.pattern.permute.xlu0 0
        %779 = vperm.xlu0 %778, %v773
        %v780 = vpop.permute.xlu0 %779
        %v782 = vsub.f32 %v767, %v780
        %v783 = vmul.f32 %v782, 1.442695
        %v784 = vpow.pop %v783
        %s785 = scalar_lea.vmem [#allocation3], 8
        %v786 = vld [vmem:[%s785] sm:$0xff]
        %v787 = vmul.f32 %v776, %v786
        %v788 = vsel %vm654, %v784, 0.0
        %789 = vadd.xlane.f32.xlu0 %v788
        %v790 = vpop.xlane.xlu0 %789
        %v791 = vadd.f32 %v787, %v790
        %792 = vst.msk [vmem:[%s785] sm:$0xff] %vm704, %v791
        %s793 = scalar_lea.vmem [#allocation4], 8
        %v794 = vld [vmem:[%s793] sm:$0xff]
        %796 = vset.pattern.permute.xlu0 0
        %797 = vperm.xlu0 %796, %v776
        %v798 = vpop.permute.xlu0 %797
        %v800 = vmul.f32 %v798, %v794
        %802 = vrot.lane.b32.xlu0 %v648, 120
        %v803 = vpop.permute.xlu0 %802
        %v806 = vsel %vm654, %v784, 0
        %808 = vmatpush.msra.mxu0 0.0
        %809 = vmatpush.msra.mxu0 0.0
        %810 = vmatpush.msra.mxu0 0.0
        %811 = vmatpush.msra.mxu0 0.0
        %812 = vmatpush.msra.mxu0 0.0
        %813 = vmatpush.msra.mxu0 0.0
        %814 = vmatpush.msra.mxu0 0.0
        %815 = vmatpush.msra.mxu0 0.0
        %816 = vmatpush.msra.mxu0 0.0
        %817 = vmatpush.msra.mxu0 0.0
        %818 = vmatpush.msra.mxu0 0.0
        %819 = vmatpush.msra.mxu0 0.0
        %820 = vmatpush.msra.mxu0 0.0
        %821 = vmatpush.msra.mxu0 0.0
        %822 = vmatpush.msra.mxu0 0.0
        %823 = vmatpush.msra.mxu0 %v803
        %824 = vmatmul.f32.gmra.mxu0 %v806
        %v825 = vpop.f32.mrf.mxu0
        %v826 = vadd.f32 0.0, %v825
        %827 = vdwg.mxu0
        %v828 = vadd.f32 %v800, %v826
        %829 = vst.msk [vmem:[%s793] sm:$0xff] %vm654, %v828
        %830 = vst.msk [vmem:[%s768] sm:$0xff] %vm704, %v773
        %831 = vrot.lane.b32.xlu0 %v646, 112
        %v832 = vpop.permute.xlu0 %831
        %833 = vrot.lane.b32.xlu0 %v647, 112
        %v834 = vpop.permute.xlu0 %833
        %v835 = vsel %vm654, %v832, 0
        %v837 = vsel %vm654, %v834, 0
        %839 = vmatpush.xpose.msra.mxu0 0.0
        %840 = vmatpush.xpose.msra.mxu0 0.0
        %841 = vmatpush.xpose.msra.mxu0 0.0
        %842 = vmatpush.xpose.msra.mxu0 0.0
        %843 = vmatpush.xpose.msra.mxu0 0.0
        %844 = vmatpush.xpose.msra.mxu0 0.0
        %845 = vmatpush.xpose.msra.mxu0 0.0
        %846 = vmatpush.xpose.msra.mxu0 0.0
        %847 = vmatpush.xpose.msra.mxu0 0.0
        %848 = vmatpush.xpose.msra.mxu0 0.0
        %849 = vmatpush.xpose.msra.mxu0 0.0
        %850 = vmatpush.xpose.msra.mxu0 0.0
        %851 = vmatpush.xpose.msra.mxu0 0.0
        %852 = vmatpush.xpose.msra.mxu0 0.0
        %853 = vmatpush.xpose.msra.mxu0 0.0
        %854 = vmatpush.xpose.msra.mxu0 %v837
        %855 = vmatmul.f32.gmra.mxu0 %v835
        %v856 = vpop.f32.mrf.mxu0
        %v857 = vadd.f32 0.0, %v856
        %858 = vdwg.mxu0
        %v859 = vsel %vm653, %v857, -1e+30
        %s860 = scalar_lea.vmem [#allocation2], 16
        %v861 = vld [vmem:[%s860] sm:$0xff]
        %v862 = vsel %vm654, %v859, -inf
        %863 = vmax.xlane.f32.xlu0 %v862
        %v864 = vpop.xlane.xlu0 %863
        %v865 = vmax.f32 %v861, %v864
        %v866 = vsub.f32 %v861, %v865
        %v867 = vmul.f32 %v866, 1.442695
        %v868 = vpow.pop %v867
        %870 = vset.pattern.permute.xlu0 0
        %871 = vperm.xlu0 %870, %v865
        %v872 = vpop.permute.xlu0 %871
        %v874 = vsub.f32 %v859, %v872
        %v875 = vmul.f32 %v874, 1.442695
        %v876 = vpow.pop %v875
        %s877 = scalar_lea.vmem [#allocation3], 16
        %v878 = vld [vmem:[%s877] sm:$0xff]
        %v879 = vmul.f32 %v868, %v878
        %v880 = vsel %vm654, %v876, 0.0
        %881 = vadd.xlane.f32.xlu0 %v880
        %v882 = vpop.xlane.xlu0 %881
        %v883 = vadd.f32 %v879, %v882
        %884 = vst.msk [vmem:[%s877] sm:$0xff] %vm704, %v883
        %s885 = scalar_lea.vmem [#allocation4], 16
        %v886 = vld [vmem:[%s885] sm:$0xff]
        %888 = vset.pattern.permute.xlu0 0
        %889 = vperm.xlu0 %888, %v868
        %v890 = vpop.permute.xlu0 %889
        %v892 = vmul.f32 %v890, %v886
        %893 = vrot.lane.b32.xlu0 %v648, 112
        %v894 = vpop.permute.xlu0 %893
        %v897 = vsel %vm654, %v876, 0
        %899 = vmatpush.msra.mxu0 0.0
        %900 = vmatpush.msra.mxu0 0.0
        %901 = vmatpush.msra.mxu0 0.0
        %902 = vmatpush.msra.mxu0 0.0
        %903 = vmatpush.msra.mxu0 0.0
        %904 = vmatpush.msra.mxu0 0.0
        %905 = vmatpush.msra.mxu0 0.0
        %906 = vmatpush.msra.mxu0 0.0
        %907 = vmatpush.msra.mxu0 0.0
        %908 = vmatpush.msra.mxu0 0.0
        %909 = vmatpush.msra.mxu0 0.0
        %910 = vmatpush.msra.mxu0 0.0
        %911 = vmatpush.msra.mxu0 0.0
        %912 = vmatpush.msra.mxu0 0.0
        %913 = vmatpush.msra.mxu0 0.0
        %914 = vmatpush.msra.mxu0 %v894
        %915 = vmatmul.f32.gmra.mxu0 %v897
        %v916 = vpop.f32.mrf.mxu0
        %v917 = vadd.f32 0.0, %v916
        %918 = vdwg.mxu0
        %v919 = vadd.f32 %v892, %v917
        %920 = vst.msk [vmem:[%s885] sm:$0xff] %vm654, %v919
        %921 = vst.msk [vmem:[%s860] sm:$0xff] %vm704, %v865
        %922 = vrot.lane.b32.xlu0 %v646, 104
        %v923 = vpop.permute.xlu0 %922
        %924 = vrot.lane.b32.xlu0 %v647, 104
        %v925 = vpop.permute.xlu0 %924
        %v926 = vsel %vm654, %v923, 0
        %v928 = vsel %vm654, %v925, 0
        %930 = vmatpush.xpose.msra.mxu0 0.0
        %931 = vmatpush.xpose.msra.mxu0 0.0
        %932 = vmatpush.xpose.msra.mxu0 0.0
        %933 = vmatpush.xpose.msra.mxu0 0.0
        %934 = vmatpush.xpose.msra.mxu0 0.0
        %935 = vmatpush.xpose.msra.mxu0 0.0
        %936 = vmatpush.xpose.msra.mxu0 0.0
        %937 = vmatpush.xpose.msra.mxu0 0.0
        %938 = vmatpush.xpose.msra.mxu0 0.0
        %939 = vmatpush.xpose.msra.mxu0 0.0
        %940 = vmatpush.xpose.msra.mxu0 0.0
        %941 = vmatpush.xpose.msra.mxu0 0.0
        %942 = vmatpush.xpose.msra.mxu0 0.0
        %943 = vmatpush.xpose.msra.mxu0 0.0
        %944 = vmatpush.xpose.msra.mxu0 0.0
        %945 = vmatpush.xpose.msra.mxu0 %v928
        %946 = vmatmul.f32.gmra.mxu0 %v926
        %v947 = vpop.f32.mrf.mxu0
        %v948 = vadd.f32 0.0, %v947
        %949 = vdwg.mxu0
        %v950 = vsel %vm653, %v948, -1e+30
        %s951 = scalar_lea.vmem [#allocation2], 24
        %v952 = vld [vmem:[%s951] sm:$0xff]
        %v953 = vsel %vm654, %v950, -inf
        %954 = vmax.xlane.f32.xlu0 %v953
        %v955 = vpop.xlane.xlu0 %954
        %v956 = vmax.f32 %v952, %v955
        %v957 = vsub.f32 %v952, %v956
        %v958 = vmul.f32 %v957, 1.442695
        %v959 = vpow.pop %v958
        %961 = vset.pattern.permute.xlu0 0
        %962 = vperm.xlu0 %961, %v956
        %v963 = vpop.permute.xlu0 %962
        %v965 = vsub.f32 %v950, %v963
        %v966 = vmul.f32 %v965, 1.442695
        %v967 = vpow.pop %v966
        %s968 = scalar_lea.vmem [#allocation3], 24
        %v969 = vld [vmem:[%s968] sm:$0xff]
        %v970 = vmul.f32 %v959, %v969
        %v971 = vsel %vm654, %v967, 0.0
        %972 = vadd.xlane.f32.xlu0 %v971
        %v973 = vpop.xlane.xlu0 %972
        %v974 = vadd.f32 %v970, %v973
        %975 = vst.msk [vmem:[%s968] sm:$0xff] %vm704, %v974
        %s976 = scalar_lea.vmem [#allocation4], 24
        %v977 = vld [vmem:[%s976] sm:$0xff]
        %979 = vset.pattern.permute.xlu0 0
        %980 = vperm.xlu0 %979, %v959
        %v981 = vpop.permute.xlu0 %980
        %v983 = vmul.f32 %v981, %v977
        %984 = vrot.lane.b32.xlu0 %v648, 104
        %v985 = vpop.permute.xlu0 %984
        %v988 = vsel %vm654, %v967, 0
        %990 = vmatpush.msra.mxu0 0.0
        %991 = vmatpush.msra.mxu0 0.0
        %992 = vmatpush.msra.mxu0 0.0
        %993 = vmatpush.msra.mxu0 0.0
        %994 = vmatpush.msra.mxu0 0.0
        %995 = vmatpush.msra.mxu0 0.0
        %996 = vmatpush.msra.mxu0 0.0
        %997 = vmatpush.msra.mxu0 0.0
        %998 = vmatpush.msra.mxu0 0.0
        %999 = vmatpush.msra.mxu0 0.0
        %1000 = vmatpush.msra.mxu0 0.0
        %1001 = vmatpush.msra.mxu0 0.0
        %1002 = vmatpush.msra.mxu0 0.0
        %1003 = vmatpush.msra.mxu0 0.0
        %1004 = vmatpush.msra.mxu0 0.0
        %1005 = vmatpush.msra.mxu0 %v985
        %1006 = vmatmul.f32.gmra.mxu0 %v988
        %v1007 = vpop.f32.mrf.mxu0
        %v1008 = vadd.f32 0.0, %v1007
        %1009 = vdwg.mxu0
        %v1010 = vadd.f32 %v983, %v1008
        %1011 = vst.msk [vmem:[%s976] sm:$0xff] %vm654, %v1010
        %1012 = vst.msk [vmem:[%s951] sm:$0xff] %vm704, %v956
      $region44: #{multi_head_attention_forward.4} parent=31 // pred_fallthru
        _
      // Predicated region
      $region45: #{multi_head_attention_forward.4} parent=31 // pred_check
        %p1013 = pneg %p260
      $region46: #{multi_head_attention_forward.4} parent=31 // pred_check_branch
        %1015 = sbr.rel (%p1013) target = $region48
      $region47: #{multi_head_attention_forward.4} parent=31 // pred_region
        %v1016 = vld [vmem:[#allocation4] sm:$0xff]
        %v1017 = vld [vmem:[#allocation3] sm:$0xff]
        %1019 = vset.pattern.permute.xlu0 0
        %1020 = vperm.xlu0 %1019, %v1017
        %v1021 = vpop.permute.xlu0 %1020
        %v1023 = vrcp.pop %v1021
        %v1024 = vmul.f32 %v1021, %v1023
        %v1025 = vsub.f32 1.0, %v1024
        %v1026 = vmul.f32 %v1023, %v1025
        %v1027 = vadd.f32 %v1023, %v1026
        %vm1028 = vweird.f32 %v1021
        %vm1029 = vweird.f32 %v1023
        %vm1030 = vmor %vm1028, %vm1029
        %v1031 = vsel %vm1030, %v1023, %v1027
        %v1032 = vand.u32 2147483647, %v1021
        %vm1033 = vcmp.eq.f32.partialorder %v1032, 8.507059e+37
        %v1034 = vand.u32 %v1021, 2147483648
        %v1035 = vor.u32 1.1754944e-38, %v1034
        %v1036 = vsel %vm1033, %v1035, %v1031
        %v1037 = vmul.f32 %v1016, %v1036
        %s1038 = scalar_lea.vmem [#allocation4], 8
        %v1039 = vld [vmem:[%s1038] sm:$0xff]
        %s1040 = scalar_lea.vmem [#allocation3], 8
        %v1041 = vld [vmem:[%s1040] sm:$0xff]
        %1043 = vset.pattern.permute.xlu0 0
        %1044 = vperm.xlu0 %1043, %v1041
        %v1045 = vpop.permute.xlu0 %1044
        %v1047 = vrcp.pop %v1045
        %v1048 = vmul.f32 %v1045, %v1047
        %v1049 = vsub.f32 1.0, %v1048
        %v1050 = vmul.f32 %v1047, %v1049
        %v1051 = vadd.f32 %v1047, %v1050
        %vm1052 = vweird.f32 %v1045
        %vm1053 = vweird.f32 %v1047
        %vm1054 = vmor %vm1052, %vm1053
        %v1055 = vsel %vm1054, %v1047, %v1051
        %v1056 = vand.u32 2147483647, %v1045
        %vm1057 = vcmp.eq.f32.partialorder %v1056, 8.507059e+37
        %v1058 = vand.u32 %v1045, 2147483648
        %v1059 = vor.u32 1.1754944e-38, %v1058
        %v1060 = vsel %vm1057, %v1059, %v1055
        %v1061 = vmul.f32 %v1039, %v1060
        %s1062 = scalar_lea.vmem [#allocation4], 16
        %v1063 = vld [vmem:[%s1062] sm:$0xff]
        %s1064 = scalar_lea.vmem [#allocation3], 16
        %v1065 = vld [vmem:[%s1064] sm:$0xff]
        %1067 = vset.pattern.permute.xlu0 0
        %1068 = vperm.xlu0 %1067, %v1065
        %v1069 = vpop.permute.xlu0 %1068
        %v1071 = vrcp.pop %v1069
        %v1072 = vmul.f32 %v1069, %v1071
        %v1073 = vsub.f32 1.0, %v1072
        %v1074 = vmul.f32 %v1071, %v1073
        %v1075 = vadd.f32 %v1071, %v1074
        %vm1076 = vweird.f32 %v1069
        %vm1077 = vweird.f32 %v1071
        %vm1078 = vmor %vm1076, %vm1077
        %v1079 = vsel %vm1078, %v1071, %v1075
        %v1080 = vand.u32 2147483647, %v1069
        %vm1081 = vcmp.eq.f32.partialorder %v1080, 8.507059e+37
        %v1082 = vand.u32 %v1069, 2147483648
        %v1083 = vor.u32 1.1754944e-38, %v1082
        %v1084 = vsel %vm1081, %v1083, %v1079
        %v1085 = vmul.f32 %v1063, %v1084
        %s1086 = scalar_lea.vmem [#allocation4], 24
        %v1087 = vld [vmem:[%s1086] sm:$0xff]
        %s1088 = scalar_lea.vmem [#allocation3], 24
        %v1089 = vld [vmem:[%s1088] sm:$0xff]
        %1091 = vset.pattern.permute.xlu0 0
        %1092 = vperm.xlu0 %1091, %v1089
        %v1093 = vpop.permute.xlu0 %1092
        %v1095 = vrcp.pop %v1093
        %v1096 = vmul.f32 %v1093, %v1095
        %v1097 = vsub.f32 1.0, %v1096
        %v1098 = vmul.f32 %v1095, %v1097
        %v1099 = vadd.f32 %v1095, %v1098
        %vm1100 = vweird.f32 %v1093
        %vm1101 = vweird.f32 %v1095
        %vm1102 = vmor %vm1100, %vm1101
        %v1103 = vsel %vm1102, %v1095, %v1099
        %v1104 = vand.u32 2147483647, %v1093
        %vm1105 = vcmp.eq.f32.partialorder %v1104, 8.507059e+37
        %v1106 = vand.u32 %v1093, 2147483648
        %v1107 = vor.u32 1.1754944e-38, %v1106
        %v1108 = vsel %vm1105, %v1107, %v1103
        %v1109 = vmul.f32 %v1087, %v1108
        %1111 = vrot.lane.b32.xlu0 %v1061, 8
        %v1112 = vpop.permute.xlu0 %1111
        %1115 = vrot.lane.b32.xlu0 %v1085, 16
        %v1116 = vpop.permute.xlu0 %1115
        %1119 = vrot.lane.b32.xlu0 %v1109, 24
        %v1120 = vpop.permute.xlu0 %1119
        %vm1122 = vcmask 64512
        %v1123 = vsel %vm1122, %v1037, %v1112
        %vm1124 = vcmask 130048
        %v1125 = vsel %vm1124, %v1123, %v1116
        %vm1126 = vcmask 195584
        %v1127 = vsel %vm1126, %v1125, %v1120
        %vm1128 = vcmask 261120
        %1129 = vst.msk [vmem:[%s259] sm:$0xff] %vm1128, %v1127
      $region48: #{multi_head_attention_forward.4} parent=31 // pred_fallthru
        _
      %p1130 = scmp.lt.s32.totalorder %s19, 1
      %s1131 = scalar_select %p1130, %s19, 1
      %p1132 = scmp.lt.s32.totalorder %s20, 0
      %s1133 = scalar_select %p1132, %s20, 0
      %s1134 = sadd.s32 %s1133, %s1131
      %s1135 = smul.addr %s1134, 8
      %s1136 = scalar_lea.vmem %s3, %s1135
      // Predicated region
      $region49: #{multi_head_attention_forward.4} parent=31 // pred_check
        %p1137 = pneg %p137
      $region50: #{multi_head_attention_forward.4} parent=31 // pred_check_branch
        %1139 = sbr.rel (%p1137) target = $region52
      $region51: #{multi_head_attention_forward.4} parent=31 // pred_region
        _
      $region52: #{multi_head_attention_forward.4} parent=31 // pred_fallthru
        _
    $region32: #{multi_head_attention_forward.4} parent=5 // pred_fallthru
      _
    %p1140 = scmp.le.s32.totalorder 2, %s9
    // Predicated region
    $region53: #{multi_head_attention_forward.4} parent=5 // pred_check
      %p1141 = pneg %p1140
    $region54: #{multi_head_attention_forward.4} parent=5 // pred_check_branch
      %1143 = sbr.rel (%p1141) target = $region56
    $region55: #{multi_head_attention_forward.4} parent=5 // pred_region
      %s1144 = ssub.s32 %s9, 2
      // Predicated region
      $region57: #{multi_head_attention_forward.4} parent=55 // pred_check
        %p1145 = pneg %p143
      $region58: #{multi_head_attention_forward.4} parent=55 // pred_check_branch
        %1147 = sbr.rel (%p1145) target = $region60
      $region59: #{multi_head_attention_forward.4} parent=55 // pred_region
        %p1148 = scmp.lt.s32.totalorder %s22, 1
        %s1149 = scalar_select %p1148, %s22, 1
        %p1150 = scmp.lt.s32.totalorder %s23, 0
        %s1151 = scalar_select %p1150, %s23, 0
        %s1152 = sadd.s32 %s1151, %s1149
        %s1153 = smul.addr %s1152, 8
        %s1154 = scalar_lea.vmem %s3, %s1153
      $region60: #{multi_head_attention_forward.4} parent=55 // pred_fallthru
        _
    $region56: #{multi_head_attention_forward.4} parent=5 // pred_fallthru
      _
  $region6: #{multi_head_attention_forward.4} parent=0 // loop_footer
    %s13 = sadd.s32 1, %s9
  $region7: #{multi_head_attention_forward.4} parent=0 // loop_footer_branch
    %8 = sbr.rel target = $region3
  $region8: #{multi_head_attention_forward.4} parent=0 // loop_exit
    _

</llo_original>
